<compile_context>
chip_gen: v6e
topology: v6e:2x2x1
jax: 0.10.0
libtpu: 0.0.40
codegen_flags: <defaults>
</compile_context>

<pallas_src>
import jax
import jax.numpy as jnp
from jax import lax
from jax.experimental import pallas as pl
from jax.experimental.pallas import tpu as pltpu

IN_DIM = 8 * 8 * 3   # 192
H1 = 512
H2 = 256
OUT_DIM = 1
NEG_SLOPE = 0.2
LANE = 128
TB_MAX = 2048        # rows per grid step; ~12 MiB VMEM incl. f32 temps


def _round_up(n, m):
    return ((n + m - 1) // m) * m


def _choose_tb(batch):
    """Rows per grid step: multiple of 128 (lane-dense output block), capped at
    TB_MAX, and >= 2 grid steps once the batch is big enough so the v7x
    megacore 'parallel' axis really splits work across both TensorCores."""
    if batch <= 256:
        return max(LANE, _round_up(batch, LANE))          # single small tile
    n_tiles = max(2, pl.cdiv(batch, TB_MAX))
    return min(TB_MAX, _round_up(pl.cdiv(batch, n_tiles), LANE))


def _leaky_relu(x):
    # slope in (0,1): max(x, slope*x) == LeakyReLU(x); 2 VPU ops, no select.
    return jnp.maximum(x, NEG_SLOPE * x)


def discriminator_kernel(x_ref, w1_ref, b1_ref, w2_ref, b2_ref, w3_ref, b3_ref,
                         o_ref):
    # x: (TB, 192) f32 ; w1: (192, 512) bf16 ; w2: (512, 256) bf16
    # b1: (1, 512) f32 ; b2: (1, 256) f32 ; w3: (8, 256) f32 (row 0 real)
    # b3: (1,) f32 in SMEM ; out: (1, TB) f32 (batch index in lanes)
    x = x_ref[...].astype(jnp.bfloat16)

    # Layer 1: bf16 MXU matmul, f32 accumulate, f32 epilogue.
    h1 = jnp.dot(x, w1_ref[...], preferred_element_type=jnp.float32)
    h1 = _leaky_relu(h1 + b1_ref[...])

    # Layer 2: cast activations back to bf16 for the MXU.
    h2 = jnp.dot(h1.astype(jnp.bfloat16), w2_ref[...],
                 preferred_element_type=jnp.float32)
    h2 = _leaky_relu(h2 + b2_ref[...])

    # Layer 3 (256 -> 1), laid out lane-dense: contract the feature dim of h2
    # against the w3 rows -> (8, TB); row 0 is the real logit row with the
    # batch index in lanes, so the final store is a contiguous (1, TB) slab.
    logits8 = lax.dot_general(
        w3_ref[...], h2,
        dimension_numbers=(((1,), (1,)), ((), ())),
        preferred_element_type=jnp.float32)               # (8, TB)
    logits = logits8[0:1, :] + b3_ref[0]                   # (1, TB)
    o_ref[...] = jax.nn.sigmoid(logits).astype(o_ref.dtype)


def discriminator_forward(x, prepared_params):
    """x: (B, 192) float32. Returns (B, 1) float32 in [0, 1]."""
    w1, b1, w2, b2, w3_rows, b3 = prepared_params
    B = x.shape[0]

    TB = _choose_tb(B)
    n_tiles = pl.cdiv(B, TB)
    total_rows = n_tiles * TB

    flops = (2 * total_rows * (IN_DIM * H1 + H1 * H2)      # main matmuls
             + 2 * total_rows * 8 * H2)                    # final (8,256)xh2^T
    bytes_accessed = (B * IN_DIM * 4                       # x (f32, no pre-pass)
                      + IN_DIM * H1 * 2 + H1 * H2 * 2      # w1, w2 (bf16)
                      + (H1 + H2) * 4 + 8 * H2 * 4 + 4     # b1, b2, w3, b3
                      + total_rows * 4)                    # compact f32 output

    out_row = pl.pallas_call(
        discriminator_kernel,
        out_shape=jax.ShapeDtypeStruct((1, total_rows), jnp.float32),
        grid=(n_tiles,),
        in_specs=[
            pl.BlockSpec((TB, IN_DIM), lambda i: (i, 0)),   # x: streamed per tile
            pl.BlockSpec((IN_DIM, H1), lambda i: (0, 0)),   # w1: VMEM-resident
            pl.BlockSpec((1, H1),      lambda i: (0, 0)),   # b1
            pl.BlockSpec((H1, H2),     lambda i: (0, 0)),   # w2
            pl.BlockSpec((1, H2),      lambda i: (0, 0)),   # b2
            pl.BlockSpec((8, H2),      lambda i: (0, 0)),   # w3 rows (row 0 real)
            pl.BlockSpec(memory_space=pltpu.MemorySpace.SMEM),  # b3 scalar
        ],
        out_specs=pl.BlockSpec((1, TB), lambda i: (0, i)),  # lane-dense output
        compiler_params=pltpu.CompilerParams(
            dimension_semantics=("parallel",),
            vmem_limit_bytes=32 * 1024 * 1024),
        cost_estimate=pl.CostEstimate(flops=flops,
                                      transcendentals=total_rows,
                                      bytes_accessed=bytes_accessed),
    )(x, w1, b1, w2, b2, w3_rows, b3)

    return out_row[0, :B].reshape(B, OUT_DIM)


def init_params(key):
    """PyTorch nn.Linear default init (uniform(-1/sqrt(fan_in), 1/sqrt(fan_in))),
    stored as (in_features, out_features) so forward is x @ W + b."""
    def linear(key, fan_in, fan_out):
        kw, kb = jax.random.split(key)
        bound = 1.0 / jnp.sqrt(fan_in)
        w = jax.random.uniform(kw, (fan_in, fan_out), jnp.float32, -bound, bound)
        b = jax.random.uniform(kb, (1, fan_out), jnp.float32, -bound, bound)
        return w, b

    k1, k2, k3 = jax.random.split(key, 3)
    w1, b1 = linear(k1, IN_DIM, H1)
    w2, b2 = linear(k2, H1, H2)
    w3, b3 = linear(k3, H2, OUT_DIM)
    return (w1, b1, w2, b2, w3, b3)


def prepare_params(params):
    """Kernel layout: bf16 weights for the two big matmuls (natural shapes, no
    K padding), f32 biases, final layer as an (8, 256) f32 block whose row 0
    holds w3 (rows 1..7 zero — padded for clean MXU sublane alignment), and
    b3 as a (1,) f32 SMEM scalar."""
    w1, b1, w2, b2, w3, b3 = params
    w1b = w1.astype(jnp.bfloat16)                                   # (192, 512)
    w2b = w2.astype(jnp.bfloat16)                                   # (512, 256)
    w3_rows = jnp.zeros((8, H2), jnp.float32).at[0].set(
        w3.reshape(H2).astype(jnp.float32))                         # (8, 256)
    b3s = b3.reshape(OUT_DIM).astype(jnp.float32)                   # (1,)
    return (w1b, b1, w2b, b2, w3_rows, b3s)


if __name__ == "__main__":
    key = jax.random.PRNGKey(0)
    k_params, k_x = jax.random.split(key)

    params = init_params(k_params)
    prepared = prepare_params(params)

    batch = 2
    # Input to the discriminator is a flattened 8x8x3 patch per sample.
    x = jax.random.normal(k_x, (batch, IN_DIM), dtype=jnp.float32)

    out = discriminator_forward(x, prepared)
    out = jax.block_until_ready(out)

    # Reference mirroring the kernel numerics (bf16 matmuls, f32 accumulate,
    # f32 epilogue / final layer).
    w1b, b1, w2b, b2, w3_rows, b3s = prepared
    xb = x.astype(jnp.bfloat16)
    h1 = jnp.dot(xb, w1b, preferred_element_type=jnp.float32) + b1
    h1 = jnp.maximum(h1, NEG_SLOPE * h1)
    h2 = jnp.dot(h1.astype(jnp.bfloat16), w2b,
                 preferred_element_type=jnp.float32) + b2
    h2 = jnp.maximum(h2, NEG_SLOPE * h2)
    logits = jnp.dot(h2, w3_rows[0]).reshape(batch, 1) + b3s[0]
    ref = jax.nn.sigmoid(logits)

    assert out.shape == (batch, OUT_DIM)
    assert bool(jnp.all(jnp.isfinite(out))), "non-finite output"
    assert jnp.allclose(out, ref, atol=1e-3), "mismatch vs reference"

    print("KERNEL_OK")
</pallas_src>

<mosaic_0001>
module attributes {stable_mosaic.version = 11 : i64} {
  func.func @discriminator_kernel(%arg0: i32, %arg1: memref<128x192xf32, #tpu.memory_space<vmem>>, %arg2: memref<192x512xbf16, #tpu.memory_space<vmem>>, %arg3: memref<1x512xf32, #tpu.memory_space<vmem>>, %arg4: memref<512x256xbf16, #tpu.memory_space<vmem>>, %arg5: memref<1x256xf32, #tpu.memory_space<vmem>>, %arg6: memref<8x256xf32, #tpu.memory_space<vmem>>, %arg7: memref<1xf32, #tpu.memory_space<smem>>, %arg8: memref<1x128xf32, #tpu.memory_space<vmem>>) attributes {dimension_semantics = [#tpu.dimension_semantics<parallel>], iteration_bounds = array<i64: 1>, scalar_prefetch = 0 : i64, scratch_operands = 0 : i64, tpu.core_type = #tpu.core_type<tc>, window_params = [{transform_indices = @transform_0, window_bounds = array<i64: 128, 192>}, {pipeline_mode = #tpu.pipeline_mode<synchronous>, transform_indices = @transform_1, window_bounds = array<i64: 192, 512>}, {pipeline_mode = #tpu.pipeline_mode<synchronous>, transform_indices = @transform_2, window_bounds = array<i64: 1, 512>}, {pipeline_mode = #tpu.pipeline_mode<synchronous>, transform_indices = @transform_3, window_bounds = array<i64: 512, 256>}, {pipeline_mode = #tpu.pipeline_mode<synchronous>, transform_indices = @transform_4, window_bounds = array<i64: 1, 256>}, {pipeline_mode = #tpu.pipeline_mode<synchronous>, transform_indices = @transform_5, window_bounds = array<i64: 8, 256>}, {transform_indices = @transform_6, window_bounds = array<i64: 1>}, {transform_indices = @transform_7, window_bounds = array<i64: 1, 128>}]} {
    %c0 = arith.constant 0 : index
    %c0_0 = arith.constant 0 : index
    %0 = vector.load %arg1[%c0, %c0_0] : memref<128x192xf32, #tpu.memory_space<vmem>>, vector<128x192xf32>
    %1 = arith.truncf %0 : vector<128x192xf32> to vector<128x192xbf16>
    %c0_1 = arith.constant 0 : index
    %c0_2 = arith.constant 0 : index
    %2 = vector.load %arg2[%c0_1, %c0_2] : memref<192x512xbf16, #tpu.memory_space<vmem>>, vector<192x512xbf16>
    %cst = arith.constant dense<0.000000e+00> : vector<128x512xf32>
    %3 = tpu.matmul %1, %2, %cst {dimension_numbers = #tpu.dot_dimension_numbers<[1], [0], [0], [1], [0, 0, 1, 1], [], []>} : vector<128x192xbf16>, vector<192x512xbf16>, vector<128x512xf32> -> vector<128x512xf32>
    %c0_3 = arith.constant 0 : index
    %c0_4 = arith.constant 0 : index
    %4 = vector.load %arg3[%c0_3, %c0_4] : memref<1x512xf32, #tpu.memory_space<vmem>>, vector<1x512xf32>
    %5 = vector.broadcast %4 : vector<1x512xf32> to vector<128x512xf32>
    %6 = arith.addf %3, %5 : vector<128x512xf32>
    %cst_5 = arith.constant 2.000000e-01 : f32
    %7 = vector.broadcast %cst_5 : f32 to vector<128x512xf32>
    %8 = arith.mulf %7, %6 : vector<128x512xf32>
    %9 = arith.maximumf %6, %8 : vector<128x512xf32>
    %10 = arith.truncf %9 : vector<128x512xf32> to vector<128x512xbf16>
    %c0_6 = arith.constant 0 : index
    %c0_7 = arith.constant 0 : index
    %11 = vector.load %arg4[%c0_6, %c0_7] : memref<512x256xbf16, #tpu.memory_space<vmem>>, vector<512x256xbf16>
    %cst_8 = arith.constant dense<0.000000e+00> : vector<128x256xf32>
    %12 = tpu.matmul %10, %11, %cst_8 {dimension_numbers = #tpu.dot_dimension_numbers<[1], [0], [0], [1], [0, 0, 1, 1], [], []>} : vector<128x512xbf16>, vector<512x256xbf16>, vector<128x256xf32> -> vector<128x256xf32>
    %c0_9 = arith.constant 0 : index
    %c0_10 = arith.constant 0 : index
    %13 = vector.load %arg5[%c0_9, %c0_10] : memref<1x256xf32, #tpu.memory_space<vmem>>, vector<1x256xf32>
    %14 = vector.broadcast %13 : vector<1x256xf32> to vector<128x256xf32>
    %15 = arith.addf %12, %14 : vector<128x256xf32>
    %cst_11 = arith.constant 2.000000e-01 : f32
    %16 = vector.broadcast %cst_11 : f32 to vector<128x256xf32>
    %17 = arith.mulf %16, %15 : vector<128x256xf32>
    %18 = arith.maximumf %15, %17 : vector<128x256xf32>
    %c0_12 = arith.constant 0 : index
    %c0_13 = arith.constant 0 : index
    %19 = vector.load %arg6[%c0_12, %c0_13] : memref<8x256xf32, #tpu.memory_space<vmem>>, vector<8x256xf32>
    %cst_14 = arith.constant dense<0.000000e+00> : vector<8x128xf32>
    %20 = tpu.matmul %19, %18, %cst_14 {dimension_numbers = #tpu.dot_dimension_numbers<[1], [1], [0], [0], [0, 0, 1, 0], [], []>} : vector<8x256xf32>, vector<128x256xf32>, vector<8x128xf32> -> vector<8x128xf32>
    %21 = vector.extract_strided_slice %20 {offsets = [0, 0], sizes = [1, 128], strides = [1, 1]} : vector<8x128xf32> to vector<1x128xf32>
    %c0_15 = arith.constant 0 : index
    %22 = memref.load %arg7[%c0_15] : memref<1xf32, #tpu.memory_space<smem>>
    %23 = vector.broadcast %22 : f32 to vector<1x128xf32>
    %24 = arith.addf %21, %23 : vector<1x128xf32>
    %25 = arith.negf %24 : vector<1x128xf32>
    %26 = math.exp %25 : vector<1x128xf32>
    %cst_16 = arith.constant 1.000000e+00 : f32
    %27 = vector.broadcast %cst_16 : f32 to vector<1x128xf32>
    %28 = arith.addf %27, %26 : vector<1x128xf32>
    %29 = arith.divf %27, %28 : vector<1x128xf32>
    %c0_17 = arith.constant 0 : index
    %c0_18 = arith.constant 0 : index
    %30 = vector.load %arg8[%c0_17, %c0_18] : memref<1x128xf32, #tpu.memory_space<vmem>>, vector<1x128xf32>
    tpu.vector_store %arg8[%c0_17, %c0_18], %29 {strides = array<i32>} : memref<1x128xf32, #tpu.memory_space<vmem>>, vector<1x128xf32>,
    return
  }
  func.func @transform_0(%arg0: i32) -> (i32, i32) {
    %c0_i32 = arith.constant 0 : i32
    %c0_i32_0 = arith.constant 0 : i32
    return %arg0, %c0_i32 : i32, i32
  }
  func.func @transform_1(%arg0: i32) -> (i32, i32) {
    %c0_i32 = arith.constant 0 : i32
    %c0_i32_0 = arith.constant 0 : i32
    %c0_i32_1 = arith.constant 0 : i32
    return %c0_i32, %c0_i32_0 : i32, i32
  }
  func.func @transform_2(%arg0: i32) -> (i32, i32) {
    %c0_i32 = arith.constant 0 : i32
    %c0_i32_0 = arith.constant 0 : i32
    %c0_i32_1 = arith.constant 0 : i32
    return %c0_i32, %c0_i32_0 : i32, i32
  }
  func.func @transform_3(%arg0: i32) -> (i32, i32) {
    %c0_i32 = arith.constant 0 : i32
    %c0_i32_0 = arith.constant 0 : i32
    %c0_i32_1 = arith.constant 0 : i32
    return %c0_i32, %c0_i32_0 : i32, i32
  }
  func.func @transform_4(%arg0: i32) -> (i32, i32) {
    %c0_i32 = arith.constant 0 : i32
    %c0_i32_0 = arith.constant 0 : i32
    %c0_i32_1 = arith.constant 0 : i32
    return %c0_i32, %c0_i32_0 : i32, i32
  }
  func.func @transform_5(%arg0: i32) -> (i32, i32) {
    %c0_i32 = arith.constant 0 : i32
    %c0_i32_0 = arith.constant 0 : i32
    %c0_i32_1 = arith.constant 0 : i32
    return %c0_i32, %c0_i32_0 : i32, i32
  }
  func.func @transform_6(%arg0: i32) -> i32 {
    %c0_i32 = arith.constant 0 : i32
    %c0_i32_0 = arith.constant 0 : i32
    return %c0_i32 : i32
  }
  func.func @transform_7(%arg0: i32) -> (i32, i32) {
    %c0_i32 = arith.constant 0 : i32
    %c0_i32_0 = arith.constant 0 : i32
    return %c0_i32, %arg0 : i32, i32
  }
}

</mosaic_0001>

<llo_original>
// kernel: tpu_custom_call.1
$region0: #{tpu_custom_call.1}
  #allocation0 [shape = 'u32[]', space=smem, size = 0x4, offset = 0x4, fixed_abs, tag = 'smem constant byte address 0x4 - core index']
  #allocation1 [shape = 'u32[144,128]{1,0:T(1,128)}', space=vmem, size = 0x12000, scoped, tag = 'internal scratch']
  #allocation2 [shape = 'f32[1]{0:T(128)S(6)}', space=smem, size = 0x200, scoped, tag = 'scoped memory for tpu_custom_call.1']
  %s0 = inlined_call_operand.hbm [shape: f32[2,192], index: 0, kind: input, shape index: {}]
  %s1 = inlined_call_operand.hbm [shape: bf16[192,512], index: 1, kind: input, shape index: {}]
  %s2 = inlined_call_operand.vmem [shape: f32[1,512], index: 2, kind: input, shape index: {}]
  %s3 = inlined_call_operand.hbm [shape: bf16[512,256], index: 3, kind: input, shape index: {}]
  %s4 = inlined_call_operand.vmem [shape: f32[1,256], index: 4, kind: input, shape index: {}]
  %s5 = inlined_call_operand.hbm [shape: f32[8,256], index: 5, kind: input, shape index: {}]
  %s6 = inlined_call_operand.<no memory space> [shape: f32[1], index: 6, kind: input, shape index: {}]
  %s7 = inlined_call_operand.hbm [shape: f32[1,128], index: 7, kind: output, shape index: {}]
  %s8 = sld [smem:[#allocation0]]
  $region54: #{tpu_custom_call.1} parent=0
    _
  %s10 = ssub.s32 1, %s8
  %s11 = scalar_select 0, %s10, %s8
  %12 = sst [smem:[#allocation2]] %s6
  $region1: #{tpu_custom_call.1} parent=0
    #allocation3 [shape = 'u8[131072]{0}', space=vmem, size = 0x20000, scoped, tag = 'input window, operand 0, single buffered']
    #allocation4 [shape = 's32[1]{0}', space=sflag, size = 0x4, scoped, tag = 'scoped memory for tpu_custom_call.1']
    #allocation5 [shape = 's32[1]{0}', space=sflag, size = 0x4, scoped, tag = 'scoped memory for tpu_custom_call.1']
    #allocation6 [shape = 'u8[196608]{0}', space=vmem, size = 0x30000, scoped, tag = 'input window, operand 1, single buffered']
    #allocation7 [shape = 's32[1]{0}', space=sflag, size = 0x4, scoped, tag = 'scoped memory for tpu_custom_call.1']
    #allocation8 [shape = 'u8[262144]{0}', space=vmem, size = 0x40000, scoped, tag = 'input window, operand 3, single buffered']
    #allocation9 [shape = 'u8[8192]{0}', space=vmem, size = 0x2000, scoped, tag = 'input window, operand 5, single buffered']
    #allocation10 [shape = 's32[1]{0}', space=sflag, size = 0x4, scoped, tag = 'scoped memory for tpu_custom_call.1']
    #allocation11 [shape = 'u8[512]{0}', space=vmem, size = 0x400, scoped, tag = 'output window, operand 0, single buffered']
    %13 = vsyncpa [#allocation4], 0
    %14 = vsyncpa [#allocation7], 0
    %15 = vsyncpa [#allocation10], 0
    %16 = vsyncpa [#allocation5], 0
    // Predicated region
    $region2: #{tpu_custom_call.1} parent=1 // pred_check
      _
    $region3: #{tpu_custom_call.1} parent=1 // pred_check_branch
      %18 = sbr.rel (0) target = $region5
    $region4: #{tpu_custom_call.1} parent=1 // pred_region
      %s20 = ssub.s32 4096, 64
      %21 = vsyncadd [#allocation4], %s20
      %s22 = sshll.u32 [#allocation3], 4
      %s23 = int_to_ptr.vmem [resolvable:$true] %s22
      %28 = dma.hbm_to_vmem [thread:$0]  %s0, 64, %s23, [#allocation4], 64, 64, 4
    $region5: #{tpu_custom_call.1} parent=1 // pred_fallthru
      _
    // Predicated region
    $region6: #{tpu_custom_call.1} parent=1 // pred_check
      _
    $region7: #{tpu_custom_call.1} parent=1 // pred_check_branch
      %30 = sbr.rel (0) target = $region9
    $region8: #{tpu_custom_call.1} parent=1 // pred_region
      %s32 = ssub.s32 6144, 6144
      %33 = vsyncadd [#allocation7], %s32
      %s34 = sshll.u32 [#allocation6], 4
      %s35 = int_to_ptr.vmem [resolvable:$true] %s34
      %40 = dma.hbm_to_vmem [thread:$0]  %s1, 6144, %s35, [#allocation7], 256, 256, 16
    $region9: #{tpu_custom_call.1} parent=1 // pred_fallthru
      _
    // Predicated region
    $region10: #{tpu_custom_call.1} parent=1 // pred_check
      _
    $region11: #{tpu_custom_call.1} parent=1 // pred_check_branch
      %42 = sbr.rel (0) target = $region13
    $region12: #{tpu_custom_call.1} parent=1 // pred_region
      _
    $region13: #{tpu_custom_call.1} parent=1 // pred_fallthru
      _
    // Predicated region
    $region14: #{tpu_custom_call.1} parent=1 // pred_check
      _
    $region15: #{tpu_custom_call.1} parent=1 // pred_check_branch
      %44 = sbr.rel (0) target = $region17
    $region16: #{tpu_custom_call.1} parent=1 // pred_region
      %s46 = ssub.s32 8192, 8192
      %47 = vsyncadd [#allocation7], %s46
      %s48 = sshll.u32 [#allocation8], 4
      %s49 = int_to_ptr.vmem [resolvable:$true] %s48
      %54 = dma.hbm_to_vmem [thread:$0]  %s3, 8192, %s49, [#allocation7], 128, 128, 8
    $region17: #{tpu_custom_call.1} parent=1 // pred_fallthru
      _
    // Predicated region
    $region18: #{tpu_custom_call.1} parent=1 // pred_check
      _
    $region19: #{tpu_custom_call.1} parent=1 // pred_check_branch
      %56 = sbr.rel (0) target = $region21
    $region20: #{tpu_custom_call.1} parent=1 // pred_region
      _
    $region21: #{tpu_custom_call.1} parent=1 // pred_fallthru
      _
    // Predicated region
    $region22: #{tpu_custom_call.1} parent=1 // pred_check
      _
    $region23: #{tpu_custom_call.1} parent=1 // pred_check_branch
      %58 = sbr.rel (0) target = $region25
    $region24: #{tpu_custom_call.1} parent=1 // pred_region
      %s60 = ssub.s32 256, 256
      %61 = vsyncadd [#allocation10], %s60
      %s63 = sshll.u32 [#allocation9], 4
      %s64 = int_to_ptr.vmem [resolvable:$true] %s63
      %66 = dma.hbm_to_vmem [thread:$0]  %s5, 256, %s64, [#allocation10]
    $region25: #{tpu_custom_call.1} parent=1 // pred_fallthru
      _
    // Predicated region
    $region26: #{tpu_custom_call.1} parent=1 // pred_check
      _
    $region27: #{tpu_custom_call.1} parent=1 // pred_check_branch
      %68 = sbr.rel (0) target = $region29
    $region28: #{tpu_custom_call.1} parent=1 // pred_region
      _
    $region29: #{tpu_custom_call.1} parent=1 // pred_fallthru
      _
    // Predicated region
    $region30: #{tpu_custom_call.1} parent=1 // pred_check
      _
    $region31: #{tpu_custom_call.1} parent=1 // pred_check_branch
      %70 = sbr.rel (0) target = $region33
    $region32: #{tpu_custom_call.1} parent=1 // pred_region
      %71 = dma.done [#allocation4], 4096
    $region33: #{tpu_custom_call.1} parent=1 // pred_fallthru
      _
    // Predicated region
    $region34: #{tpu_custom_call.1} parent=1 // pred_check
      _
    $region35: #{tpu_custom_call.1} parent=1 // pred_check_branch
      %73 = sbr.rel (0) target = $region37
    $region36: #{tpu_custom_call.1} parent=1 // pred_region
      %74 = dma.done [#allocation7], 6144
    $region37: #{tpu_custom_call.1} parent=1 // pred_fallthru
      _
    // Predicated region
    $region38: #{tpu_custom_call.1} parent=1 // pred_check
      _
    $region39: #{tpu_custom_call.1} parent=1 // pred_check_branch
      %76 = sbr.rel (0) target = $region41
    $region40: #{tpu_custom_call.1} parent=1 // pred_region
      %77 = dma.done [#allocation7], 8192
    $region41: #{tpu_custom_call.1} parent=1 // pred_fallthru
      _
    // Predicated region
    $region42: #{tpu_custom_call.1} parent=1 // pred_check
      _
    $region43: #{tpu_custom_call.1} parent=1 // pred_check_branch
      %79 = sbr.rel (0) target = $region45
    $region44: #{tpu_custom_call.1} parent=1 // pred_region
      %80 = dma.done [#allocation10], 256
    $region45: #{tpu_custom_call.1} parent=1 // pred_fallthru
      _
    %v82 = vld [vmem:[#allocation3] sm:$0xf]
    %v83 = vld [vmem:[#allocation3 + $0x4] sm:$0xf]
    %v84 = vld [vmem:[#allocation3 + $0x8] sm:$0xf]
    %v85 = vld [vmem:[#allocation3 + $0xc] sm:$0xf]
    %v86 = vld [vmem:[#allocation3 + $0x10] sm:$0xf]
    %v87 = vld [vmem:[#allocation3 + $0x14] sm:$0xf]
    %v88 = vld [vmem:[#allocation3 + $0x18] sm:$0xf]
    %v89 = vld [vmem:[#allocation3 + $0x1c] sm:$0xf]
    %v90 = vld [vmem:[#allocation3 + $0x20] sm:$0xf]
    %v91 = vld [vmem:[#allocation3 + $0x24] sm:$0xf]
    %v92 = vld [vmem:[#allocation3 + $0x28] sm:$0xf]
    %v93 = vld [vmem:[#allocation3 + $0x2c] sm:$0xf]
    %v94 = vld [vmem:[#allocation3 + $0x30] sm:$0xf]
    %v95 = vld [vmem:[#allocation3 + $0x34] sm:$0xf]
    %v96 = vld [vmem:[#allocation3 + $0x38] sm:$0xf]
    %v97 = vld [vmem:[#allocation3 + $0x3c] sm:$0xf]
    %v98 = vld [vmem:[#allocation3 + $0x40] sm:$0xf]
    %v99 = vld [vmem:[#allocation3 + $0x44] sm:$0xf]
    %v100 = vld [vmem:[#allocation3 + $0x48] sm:$0xf]
    %v101 = vld [vmem:[#allocation3 + $0x4c] sm:$0xf]
    %v102 = vld [vmem:[#allocation3 + $0x50] sm:$0xf]
    %v103 = vld [vmem:[#allocation3 + $0x54] sm:$0xf]
    %v104 = vld [vmem:[#allocation3 + $0x58] sm:$0xf]
    %v105 = vld [vmem:[#allocation3 + $0x5c] sm:$0xf]
    %v106 = vld [vmem:[#allocation3 + $0x60] sm:$0xf]
    %v107 = vld [vmem:[#allocation3 + $0x64] sm:$0xf]
    %v108 = vld [vmem:[#allocation3 + $0x68] sm:$0xf]
    %v109 = vld [vmem:[#allocation3 + $0x6c] sm:$0xf]
    %v110 = vld [vmem:[#allocation3 + $0x70] sm:$0xf]
    %v111 = vld [vmem:[#allocation3 + $0x74] sm:$0xf]
    %v112 = vld [vmem:[#allocation3 + $0x78] sm:$0xf]
    %v113 = vld [vmem:[#allocation3 + $0x7c] sm:$0xf]
    %v114 = vld [vmem:[#allocation3 + $0x80] sm:$0xf]
    %v115 = vld [vmem:[#allocation3 + $0x84] sm:$0xf]
    %v116 = vld [vmem:[#allocation3 + $0x88] sm:$0xf]
    %v117 = vld [vmem:[#allocation3 + $0x8c] sm:$0xf]
    %v118 = vld [vmem:[#allocation3 + $0x90] sm:$0xf]
    %v119 = vld [vmem:[#allocation3 + $0x94] sm:$0xf]
    %v120 = vld [vmem:[#allocation3 + $0x98] sm:$0xf]
    %v121 = vld [vmem:[#allocation3 + $0x9c] sm:$0xf]
    %v122 = vld [vmem:[#allocation3 + $0xa0] sm:$0xf]
    %v123 = vld [vmem:[#allocation3 + $0xa4] sm:$0xf]
    %v124 = vld [vmem:[#allocation3 + $0xa8] sm:$0xf]
    %v125 = vld [vmem:[#allocation3 + $0xac] sm:$0xf]
    %v126 = vld [vmem:[#allocation3 + $0xb0] sm:$0xf]
    %v127 = vld [vmem:[#allocation3 + $0xb4] sm:$0xf]
    %v128 = vld [vmem:[#allocation3 + $0xb8] sm:$0xf]
    %v129 = vld [vmem:[#allocation3 + $0xbc] sm:$0xf]
    %v130 = vld [vmem:[#allocation3 + $0xc0] sm:$0xf]
    %v131 = vld [vmem:[#allocation3 + $0xc4] sm:$0xf]
    %v132 = vld [vmem:[#allocation3 + $0xc8] sm:$0xf]
    %v133 = vld [vmem:[#allocation3 + $0xcc] sm:$0xf]
    %v134 = vld [vmem:[#allocation3 + $0xd0] sm:$0xf]
    %v135 = vld [vmem:[#allocation3 + $0xd4] sm:$0xf]
    %v136 = vld [vmem:[#allocation3 + $0xd8] sm:$0xf]
    %v137 = vld [vmem:[#allocation3 + $0xdc] sm:$0xf]
    %v138 = vld [vmem:[#allocation3 + $0xe0] sm:$0xf]
    %v139 = vld [vmem:[#allocation3 + $0xe4] sm:$0xf]
    %v140 = vld [vmem:[#allocation3 + $0xe8] sm:$0xf]
    %v141 = vld [vmem:[#allocation3 + $0xec] sm:$0xf]
    %v142 = vld [vmem:[#allocation3 + $0xf0] sm:$0xf]
    %v143 = vld [vmem:[#allocation3 + $0xf4] sm:$0xf]
    %v144 = vld [vmem:[#allocation3 + $0xf8] sm:$0xf]
    %v145 = vld [vmem:[#allocation3 + $0xfc] sm:$0xf]
    %v210 = vcombine.low %v82, %v83
    %v211 = vcombine.low %v84, %v85
    %v213 = vunpack.c.l.s4 1983009808
    %v214 = vunpack.c.0.s8 %v213
    %v215 = vlaneseq
    %v216 = vshrl.u32 %v215, 7
    %v217 = vsub.s32 %v214, %v216
    %v218 = vrot.slane %v210, %v217
    %v220 = vunpack.c.l.s4 1983009808
    %v221 = vunpack.c.0.s8 %v220
    %v222 = vlaneseq
    %v223 = vshrl.u32 %v222, 7
    %v224 = vsub.s32 %v221, %v223
    %v225 = vrot.slane %v211, %v224
    %v226 = vcombine.low %v218, %v225
    %v227 = vcombine.high %v218, %v225
    %v228 = vcombine.low %v86, %v87
    %v229 = vcombine.low %v88, %v89
    %v231 = vunpack.c.l.s4 1983009808
    %v232 = vunpack.c.0.s8 %v231
    %v233 = vlaneseq
    %v234 = vshrl.u32 %v233, 7
    %v235 = vsub.s32 %v232, %v234
    %v236 = vrot.slane %v228, %v235
    %v238 = vunpack.c.l.s4 1983009808
    %v239 = vunpack.c.0.s8 %v238
    %v240 = vlaneseq
    %v241 = vshrl.u32 %v240, 7
    %v242 = vsub.s32 %v239, %v241
    %v243 = vrot.slane %v229, %v242
    %v244 = vcombine.low %v236, %v243
    %v245 = vcombine.high %v236, %v243
    %v246 = vcombine.low %v90, %v91
    %v247 = vcombine.low %v92, %v93
    %v249 = vunpack.c.l.s4 1983009808
    %v250 = vunpack.c.0.s8 %v249
    %v251 = vlaneseq
    %v252 = vshrl.u32 %v251, 7
    %v253 = vsub.s32 %v250, %v252
    %v254 = vrot.slane %v246, %v253
    %v256 = vunpack.c.l.s4 1983009808
    %v257 = vunpack.c.0.s8 %v256
    %v258 = vlaneseq
    %v259 = vshrl.u32 %v258, 7
    %v260 = vsub.s32 %v257, %v259
    %v261 = vrot.slane %v247, %v260
    %v262 = vcombine.low %v254, %v261
    %v263 = vcombine.high %v254, %v261
    %v264 = vcombine.low %v94, %v95
    %v265 = vcombine.low %v96, %v97
    %v267 = vunpack.c.l.s4 1983009808
    %v268 = vunpack.c.0.s8 %v267
    %v269 = vlaneseq
    %v270 = vshrl.u32 %v269, 7
    %v271 = vsub.s32 %v268, %v270
    %v272 = vrot.slane %v264, %v271
    %v274 = vunpack.c.l.s4 1983009808
    %v275 = vunpack.c.0.s8 %v274
    %v276 = vlaneseq
    %v277 = vshrl.u32 %v276, 7
    %v278 = vsub.s32 %v275, %v277
    %v279 = vrot.slane %v265, %v278
    %v280 = vcombine.low %v272, %v279
    %v281 = vcombine.high %v272, %v279
    %v282 = vcombine.low %v98, %v99
    %v283 = vcombine.low %v100, %v101
    %v285 = vunpack.c.l.s4 1983009808
    %v286 = vunpack.c.0.s8 %v285
    %v287 = vlaneseq
    %v288 = vshrl.u32 %v287, 7
    %v289 = vsub.s32 %v286, %v288
    %v290 = vrot.slane %v282, %v289
    %v292 = vunpack.c.l.s4 1983009808
    %v293 = vunpack.c.0.s8 %v292
    %v294 = vlaneseq
    %v295 = vshrl.u32 %v294, 7
    %v296 = vsub.s32 %v293, %v295
    %v297 = vrot.slane %v283, %v296
    %v298 = vcombine.low %v290, %v297
    %v299 = vcombine.high %v290, %v297
    %v300 = vcombine.low %v102, %v103
    %v301 = vcombine.low %v104, %v105
    %v303 = vunpack.c.l.s4 1983009808
    %v304 = vunpack.c.0.s8 %v303
    %v305 = vlaneseq
    %v306 = vshrl.u32 %v305, 7
    %v307 = vsub.s32 %v304, %v306
    %v308 = vrot.slane %v300, %v307
    %v310 = vunpack.c.l.s4 1983009808
    %v311 = vunpack.c.0.s8 %v310
    %v312 = vlaneseq
    %v313 = vshrl.u32 %v312, 7
    %v314 = vsub.s32 %v311, %v313
    %v315 = vrot.slane %v301, %v314
    %v316 = vcombine.low %v308, %v315
    %v317 = vcombine.high %v308, %v315
    %v318 = vcombine.low %v106, %v107
    %v319 = vcombine.low %v108, %v109
    %v321 = vunpack.c.l.s4 1983009808
    %v322 = vunpack.c.0.s8 %v321
    %v323 = vlaneseq
    %v324 = vshrl.u32 %v323, 7
    %v325 = vsub.s32 %v322, %v324
    %v326 = vrot.slane %v318, %v325
    %v328 = vunpack.c.l.s4 1983009808
    %v329 = vunpack.c.0.s8 %v328
    %v330 = vlaneseq
    %v331 = vshrl.u32 %v330, 7
    %v332 = vsub.s32 %v329, %v331
    %v333 = vrot.slane %v319, %v332
    %v334 = vcombine.low %v326, %v333
    %v335 = vcombine.high %v326, %v333
    %v336 = vcombine.low %v110, %v111
    %v337 = vcombine.low %v112, %v113
    %v339 = vunpack.c.l.s4 1983009808
    %v340 = vunpack.c.0.s8 %v339
    %v341 = vlaneseq
    %v342 = vshrl.u32 %v341, 7
    %v343 = vsub.s32 %v340, %v342
    %v344 = vrot.slane %v336, %v343
    %v346 = vunpack.c.l.s4 1983009808
    %v347 = vunpack.c.0.s8 %v346
    %v348 = vlaneseq
    %v349 = vshrl.u32 %v348, 7
    %v350 = vsub.s32 %v347, %v349
    %v351 = vrot.slane %v337, %v350
    %v352 = vcombine.low %v344, %v351
    %v353 = vcombine.high %v344, %v351
    %v354 = vcombine.low %v114, %v115
    %v355 = vcombine.low %v116, %v117
    %v357 = vunpack.c.l.s4 1983009808
    %v358 = vunpack.c.0.s8 %v357
    %v359 = vlaneseq
    %v360 = vshrl.u32 %v359, 7
    %v361 = vsub.s32 %v358, %v360
    %v362 = vrot.slane %v354, %v361
    %v364 = vunpack.c.l.s4 1983009808
    %v365 = vunpack.c.0.s8 %v364
    %v366 = vlaneseq
    %v367 = vshrl.u32 %v366, 7
    %v368 = vsub.s32 %v365, %v367
    %v369 = vrot.slane %v355, %v368
    %v370 = vcombine.low %v362, %v369
    %v371 = vcombine.high %v362, %v369
    %v372 = vcombine.low %v118, %v119
    %v373 = vcombine.low %v120, %v121
    %v375 = vunpack.c.l.s4 1983009808
    %v376 = vunpack.c.0.s8 %v375
    %v377 = vlaneseq
    %v378 = vshrl.u32 %v377, 7
    %v379 = vsub.s32 %v376, %v378
    %v380 = vrot.slane %v372, %v379
    %v382 = vunpack.c.l.s4 1983009808
    %v383 = vunpack.c.0.s8 %v382
    %v384 = vlaneseq
    %v385 = vshrl.u32 %v384, 7
    %v386 = vsub.s32 %v383, %v385
    %v387 = vrot.slane %v373, %v386
    %v388 = vcombine.low %v380, %v387
    %v389 = vcombine.high %v380, %v387
    %v390 = vcombine.low %v122, %v123
    %v391 = vcombine.low %v124, %v125
    %v393 = vunpack.c.l.s4 1983009808
    %v394 = vunpack.c.0.s8 %v393
    %v395 = vlaneseq
    %v396 = vshrl.u32 %v395, 7
    %v397 = vsub.s32 %v394, %v396
    %v398 = vrot.slane %v390, %v397
    %v400 = vunpack.c.l.s4 1983009808
    %v401 = vunpack.c.0.s8 %v400
    %v402 = vlaneseq
    %v403 = vshrl.u32 %v402, 7
    %v404 = vsub.s32 %v401, %v403
    %v405 = vrot.slane %v391, %v404
    %v406 = vcombine.low %v398, %v405
    %v407 = vcombine.high %v398, %v405
    %v408 = vcombine.low %v126, %v127
    %v409 = vcombine.low %v128, %v129
    %v411 = vunpack.c.l.s4 1983009808
    %v412 = vunpack.c.0.s8 %v411
    %v413 = vlaneseq
    %v414 = vshrl.u32 %v413, 7
    %v415 = vsub.s32 %v412, %v414
    %v416 = vrot.slane %v408, %v415
    %v418 = vunpack.c.l.s4 1983009808
    %v419 = vunpack.c.0.s8 %v418
    %v420 = vlaneseq
    %v421 = vshrl.u32 %v420, 7
    %v422 = vsub.s32 %v419, %v421
    %v423 = vrot.slane %v409, %v422
    %v424 = vcombine.low %v416, %v423
    %v425 = vcombine.high %v416, %v423
    %v426 = vcombine.low %v130, %v131
    %v427 = vcombine.low %v132, %v133
    %v429 = vunpack.c.l.s4 1983009808
    %v430 = vunpack.c.0.s8 %v429
    %v431 = vlaneseq
    %v432 = vshrl.u32 %v431, 7
    %v433 = vsub.s32 %v430, %v432
    %v434 = vrot.slane %v426, %v433
    %v436 = vunpack.c.l.s4 1983009808
    %v437 = vunpack.c.0.s8 %v436
    %v438 = vlaneseq
    %v439 = vshrl.u32 %v438, 7
    %v440 = vsub.s32 %v437, %v439
    %v441 = vrot.slane %v427, %v440
    %v442 = vcombine.low %v434, %v441
    %v443 = vcombine.high %v434, %v441
    %v444 = vcombine.low %v134, %v135
    %v445 = vcombine.low %v136, %v137
    %v447 = vunpack.c.l.s4 1983009808
    %v448 = vunpack.c.0.s8 %v447
    %v449 = vlaneseq
    %v450 = vshrl.u32 %v449, 7
    %v451 = vsub.s32 %v448, %v450
    %v452 = vrot.slane %v444, %v451
    %v454 = vunpack.c.l.s4 1983009808
    %v455 = vunpack.c.0.s8 %v454
    %v456 = vlaneseq
    %v457 = vshrl.u32 %v456, 7
    %v458 = vsub.s32 %v455, %v457
    %v459 = vrot.slane %v445, %v458
    %v460 = vcombine.low %v452, %v459
    %v461 = vcombine.high %v452, %v459
    %v462 = vcombine.low %v138, %v139
    %v463 = vcombine.low %v140, %v141
    %v465 = vunpack.c.l.s4 1983009808
    %v466 = vunpack.c.0.s8 %v465
    %v467 = vlaneseq
    %v468 = vshrl.u32 %v467, 7
    %v469 = vsub.s32 %v466, %v468
    %v470 = vrot.slane %v462, %v469
    %v472 = vunpack.c.l.s4 1983009808
    %v473 = vunpack.c.0.s8 %v472
    %v474 = vlaneseq
    %v475 = vshrl.u32 %v474, 7
    %v476 = vsub.s32 %v473, %v475
    %v477 = vrot.slane %v463, %v476
    %v478 = vcombine.low %v470, %v477
    %v479 = vcombine.high %v470, %v477
    %v480 = vcombine.low %v142, %v143
    %v481 = vcombine.low %v144, %v145
    %v483 = vunpack.c.l.s4 1983009808
    %v484 = vunpack.c.0.s8 %v483
    %v485 = vlaneseq
    %v486 = vshrl.u32 %v485, 7
    %v487 = vsub.s32 %v484, %v486
    %v488 = vrot.slane %v480, %v487
    %v490 = vunpack.c.l.s4 1983009808
    %v491 = vunpack.c.0.s8 %v490
    %v492 = vlaneseq
    %v493 = vshrl.u32 %v492, 7
    %v494 = vsub.s32 %v491, %v493
    %v495 = vrot.slane %v481, %v494
    %v496 = vcombine.low %v488, %v495
    %v497 = vcombine.high %v488, %v495
    %v530 = vpack.c.bf16 %v244, %v226
    %v531 = vpack.c.bf16 %v245, %v227
    %v532 = vpack.c.bf16 %v280, %v262
    %v533 = vpack.c.bf16 %v281, %v263
    %v534 = vpack.c.bf16 %v316, %v298
    %v535 = vpack.c.bf16 %v317, %v299
    %v536 = vpack.c.bf16 %v352, %v334
    %v537 = vpack.c.bf16 %v353, %v335
    %v538 = vpack.c.bf16 %v388, %v370
    %v539 = vpack.c.bf16 %v389, %v371
    %v540 = vpack.c.bf16 %v424, %v406
    %v541 = vpack.c.bf16 %v425, %v407
    %v542 = vpack.c.bf16 %v460, %v442
    %v543 = vpack.c.bf16 %v461, %v443
    %v544 = vpack.c.bf16 %v496, %v478
    %v545 = vpack.c.bf16 %v497, %v479
    %v546 = vld [vmem:[#allocation6] sm:$0xff]
    %v547 = vld [vmem:[#allocation6 + $0x8] sm:$0xff]
    %v548 = vld [vmem:[#allocation6 + $0x10] sm:$0xff]
    %v549 = vld [vmem:[#allocation6 + $0x18] sm:$0xff]
    %v550 = vld [vmem:[#allocation6 + $0x20] sm:$0xff]
    %v551 = vld [vmem:[#allocation6 + $0x28] sm:$0xff]
    %v552 = vld [vmem:[#allocation6 + $0x30] sm:$0xff]
    %v553 = vld [vmem:[#allocation6 + $0x38] sm:$0xff]
    %v554 = vld [vmem:[#allocation6 + $0x40] sm:$0xff]
    %v555 = vld [vmem:[#allocation6 + $0x48] sm:$0xff]
    %v556 = vld [vmem:[#allocation6 + $0x50] sm:$0xff]
    %v557 = vld [vmem:[#allocation6 + $0x58] sm:$0xff]
    %v558 = vld [vmem:[#allocation6 + $0x60] sm:$0xff]
    %v559 = vld [vmem:[#allocation6 + $0x68] sm:$0xff]
    %v560 = vld [vmem:[#allocation6 + $0x70] sm:$0xff]
    %v561 = vld [vmem:[#allocation6 + $0x78] sm:$0xff]
    %v562 = vld [vmem:[#allocation6 + $0x80] sm:$0xff]
    %v563 = vld [vmem:[#allocation6 + $0x88] sm:$0xff]
    %v564 = vld [vmem:[#allocation6 + $0x90] sm:$0xff]
    %v565 = vld [vmem:[#allocation6 + $0x98] sm:$0xff]
    %v566 = vld [vmem:[#allocation6 + $0xa0] sm:$0xff]
    %v567 = vld [vmem:[#allocation6 + $0xa8] sm:$0xff]
    %v568 = vld [vmem:[#allocation6 + $0xb0] sm:$0xff]
    %v569 = vld [vmem:[#allocation6 + $0xb8] sm:$0xff]
    %v570 = vld [vmem:[#allocation6 + $0xc0] sm:$0xff]
    %v571 = vld [vmem:[#allocation6 + $0xc8] sm:$0xff]
    %v572 = vld [vmem:[#allocation6 + $0xd0] sm:$0xff]
    %v573 = vld [vmem:[#allocation6 + $0xd8] sm:$0xff]
    %v574 = vld [vmem:[#allocation6 + $0xe0] sm:$0xff]
    %v575 = vld [vmem:[#allocation6 + $0xe8] sm:$0xff]
    %v576 = vld [vmem:[#allocation6 + $0xf0] sm:$0xff]
    %v577 = vld [vmem:[#allocation6 + $0xf8] sm:$0xff]
    %v578 = vld [vmem:[#allocation6 + $0x100] sm:$0xff]
    %v579 = vld [vmem:[#allocation6 + $0x108] sm:$0xff]
    %v580 = vld [vmem:[#allocation6 + $0x110] sm:$0xff]
    %v581 = vld [vmem:[#allocation6 + $0x118] sm:$0xff]
    %v582 = vld [vmem:[#allocation6 + $0x120] sm:$0xff]
    %v583 = vld [vmem:[#allocation6 + $0x128] sm:$0xff]
    %v584 = vld [vmem:[#allocation6 + $0x130] sm:$0xff]
    %v585 = vld [vmem:[#allocation6 + $0x138] sm:$0xff]
    %v586 = vld [vmem:[#allocation6 + $0x140] sm:$0xff]
    %v587 = vld [vmem:[#allocation6 + $0x148] sm:$0xff]
    %v588 = vld [vmem:[#allocation6 + $0x150] sm:$0xff]
    %v589 = vld [vmem:[#allocation6 + $0x158] sm:$0xff]
    %v590 = vld [vmem:[#allocation6 + $0x160] sm:$0xff]
    %v591 = vld [vmem:[#allocation6 + $0x168] sm:$0xff]
    %v592 = vld [vmem:[#allocation6 + $0x170] sm:$0xff]
    %v593 = vld [vmem:[#allocation6 + $0x178] sm:$0xff]
    %v594 = vld [vmem:[%s2] sm:$0xf]
    %v596 = vlaneseq
    %v597 = vshrl.u32 %v596, 7
    %v598 = vsub.s32 0, %v597
    %v599 = vrot.slane %v594, %v598
    %v600 = vlaneseq
    %v601 = vshrl.u32 %v600, 7
    %v602 = vsub.s32 1, %v601
    %v603 = vrot.slane %v594, %v602
    %v604 = vlaneseq
    %v605 = vshrl.u32 %v604, 7
    %v606 = vsub.s32 2, %v605
    %v607 = vrot.slane %v594, %v606
    %v608 = vlaneseq
    %v609 = vshrl.u32 %v608, 7
    %v610 = vsub.s32 3, %v609
    %v611 = vrot.slane %v594, %v610
    %v664 = vunpack.c.l.b16 %v546
    %v665 = vunpack.c.h.b16 %v546
    %v666 = vunpack.c.l.b16 %v547
    %v667 = vunpack.c.h.b16 %v547
    %v668 = vunpack.c.l.b16 %v548
    %v669 = vunpack.c.h.b16 %v548
    %v670 = vunpack.c.l.b16 %v549
    %v671 = vunpack.c.h.b16 %v549
    %v672 = vunpack.c.l.b16 %v550
    %v673 = vunpack.c.h.b16 %v550
    %v674 = vunpack.c.l.b16 %v551
    %v675 = vunpack.c.h.b16 %v551
    %v676 = vunpack.c.l.b16 %v552
    %v677 = vunpack.c.h.b16 %v552
    %v678 = vunpack.c.l.b16 %v553
    %v679 = vunpack.c.h.b16 %v553
    %v680 = vunpack.c.l.b16 %v554
    %v681 = vunpack.c.h.b16 %v554
    %v682 = vunpack.c.l.b16 %v555
    %v683 = vunpack.c.h.b16 %v555
    %v684 = vunpack.c.l.b16 %v556
    %v685 = vunpack.c.h.b16 %v556
    %v686 = vunpack.c.l.b16 %v557
    %v687 = vunpack.c.h.b16 %v557
    %v688 = vunpack.c.l.b16 %v558
    %v689 = vunpack.c.h.b16 %v558
    %v690 = vunpack.c.l.b16 %v559
    %v691 = vunpack.c.h.b16 %v559
    %v692 = vunpack.c.l.b16 %v560
    %v693 = vunpack.c.h.b16 %v560
    %v694 = vunpack.c.l.b16 %v561
    %v695 = vunpack.c.h.b16 %v561
    %v696 = vunpack.c.l.b16 %v562
    %v697 = vunpack.c.h.b16 %v562
    %v698 = vunpack.c.l.b16 %v563
    %v699 = vunpack.c.h.b16 %v563
    %v700 = vunpack.c.l.b16 %v564
    %v701 = vunpack.c.h.b16 %v564
    %v702 = vunpack.c.l.b16 %v565
    %v703 = vunpack.c.h.b16 %v565
    %v704 = vunpack.c.l.b16 %v566
    %v705 = vunpack.c.h.b16 %v566
    %v706 = vunpack.c.l.b16 %v567
    %v707 = vunpack.c.h.b16 %v567
    %v708 = vunpack.c.l.b16 %v568
    %v709 = vunpack.c.h.b16 %v568
    %v710 = vunpack.c.l.b16 %v569
    %v711 = vunpack.c.h.b16 %v569
    %v712 = vunpack.c.l.b16 %v570
    %v713 = vunpack.c.h.b16 %v570
    %v714 = vunpack.c.l.b16 %v571
    %v715 = vunpack.c.h.b16 %v571
    %v716 = vunpack.c.l.b16 %v572
    %v717 = vunpack.c.h.b16 %v572
    %v718 = vunpack.c.l.b16 %v573
    %v719 = vunpack.c.h.b16 %v573
    %v720 = vunpack.c.l.b16 %v574
    %v721 = vunpack.c.h.b16 %v574
    %v722 = vunpack.c.l.b16 %v575
    %v723 = vunpack.c.h.b16 %v575
    %v724 = vunpack.c.l.b16 %v576
    %v725 = vunpack.c.h.b16 %v576
    %v726 = vunpack.c.l.b16 %v577
    %v727 = vunpack.c.h.b16 %v577
    %v728 = vunpack.c.l.b16 %v578
    %v729 = vunpack.c.h.b16 %v578
    %v730 = vunpack.c.l.b16 %v579
    %v731 = vunpack.c.h.b16 %v579
    %v732 = vunpack.c.l.b16 %v580
    %v733 = vunpack.c.h.b16 %v580
    %v734 = vunpack.c.l.b16 %v581
    %v735 = vunpack.c.h.b16 %v581
    %v736 = vunpack.c.l.b16 %v582
    %v737 = vunpack.c.h.b16 %v582
    %v738 = vunpack.c.l.b16 %v583
    %v739 = vunpack.c.h.b16 %v583
    %v740 = vunpack.c.l.b16 %v584
    %v741 = vunpack.c.h.b16 %v584
    %v742 = vunpack.c.l.b16 %v585
    %v743 = vunpack.c.h.b16 %v585
    %v744 = vunpack.c.l.b16 %v586
    %v745 = vunpack.c.h.b16 %v586
    %v746 = vunpack.c.l.b16 %v587
    %v747 = vunpack.c.h.b16 %v587
    %v748 = vunpack.c.l.b16 %v588
    %v749 = vunpack.c.h.b16 %v588
    %v750 = vunpack.c.l.b16 %v589
    %v751 = vunpack.c.h.b16 %v589
    %v752 = vunpack.c.l.b16 %v590
    %v753 = vunpack.c.h.b16 %v590
    %v754 = vunpack.c.l.b16 %v591
    %v755 = vunpack.c.h.b16 %v591
    %v756 = vunpack.c.l.b16 %v592
    %v757 = vunpack.c.h.b16 %v592
    %v758 = vunpack.c.l.b16 %v593
    %v759 = vunpack.c.h.b16 %v593
    %v760 = vpack.c.b16 %v668, %v664
    %v761 = vpack.c.b16 %v669, %v665
    %v762 = vpack.c.b16 %v670, %v666
    %v763 = vpack.c.b16 %v671, %v667
    %v764 = vpack.c.b16 %v676, %v672
    %v765 = vpack.c.b16 %v677, %v673
    %v766 = vpack.c.b16 %v678, %v674
    %v767 = vpack.c.b16 %v679, %v675
    %v768 = vpack.c.b16 %v684, %v680
    %v769 = vpack.c.b16 %v685, %v681
    %v770 = vpack.c.b16 %v686, %v682
    %v771 = vpack.c.b16 %v687, %v683
    %v772 = vpack.c.b16 %v692, %v688
    %v773 = vpack.c.b16 %v693, %v689
    %v774 = vpack.c.b16 %v694, %v690
    %v775 = vpack.c.b16 %v695, %v691
    %v776 = vpack.c.b16 %v700, %v696
    %v777 = vpack.c.b16 %v701, %v697
    %v778 = vpack.c.b16 %v702, %v698
    %v779 = vpack.c.b16 %v703, %v699
    %v780 = vpack.c.b16 %v708, %v704
    %v781 = vpack.c.b16 %v709, %v705
    %v782 = vpack.c.b16 %v710, %v706
    %v783 = vpack.c.b16 %v711, %v707
    %v784 = vpack.c.b16 %v716, %v712
    %v785 = vpack.c.b16 %v717, %v713
    %v786 = vpack.c.b16 %v718, %v714
    %v787 = vpack.c.b16 %v719, %v715
    %v788 = vpack.c.b16 %v724, %v720
    %v789 = vpack.c.b16 %v725, %v721
    %v790 = vpack.c.b16 %v726, %v722
    %v791 = vpack.c.b16 %v727, %v723
    %v792 = vpack.c.b16 %v732, %v728
    %v793 = vpack.c.b16 %v733, %v729
    %v794 = vpack.c.b16 %v734, %v730
    %v795 = vpack.c.b16 %v735, %v731
    %v796 = vpack.c.b16 %v740, %v736
    %v797 = vpack.c.b16 %v741, %v737
    %v798 = vpack.c.b16 %v742, %v738
    %v799 = vpack.c.b16 %v743, %v739
    %v800 = vpack.c.b16 %v748, %v744
    %v801 = vpack.c.b16 %v749, %v745
    %v802 = vpack.c.b16 %v750, %v746
    %v803 = vpack.c.b16 %v751, %v747
    %v804 = vpack.c.b16 %v756, %v752
    %v805 = vpack.c.b16 %v757, %v753
    %v806 = vpack.c.b16 %v758, %v754
    %v807 = vpack.c.b16 %v759, %v755
    %vm856 = vcmask 523264
    %v858 = vsel %vm856, %v531, 0
    %v861 = vsel %vm856, %v533, 0
    %v864 = vsel %vm856, %v535, 0
    %v867 = vsel %vm856, %v537, 0
    %v870 = vsel %vm856, %v539, 0
    %v873 = vsel %vm856, %v541, 0
    %v876 = vsel %vm856, %v543, 0
    %v879 = vsel %vm856, %v545, 0
    %881 = vmatprep.subr.bf16.mxu0 %v789
    %882 = vmatpush1.bf16.msra.mxu0 %v788
    %883 = vmatprep.subr.bf16.mxu0 %v785
    %884 = vmatpush1.bf16.msra.mxu0 %v784
    %885 = vmatprep.subr.bf16.mxu0 %v781
    %886 = vmatpush1.bf16.msra.mxu0 %v780
    %887 = vmatprep.subr.bf16.mxu0 %v777
    %888 = vmatpush1.bf16.msra.mxu0 %v776
    %889 = vmatprep.subr.bf16.mxu0 %v773
    %890 = vmatpush1.bf16.msra.mxu0 %v772
    %891 = vmatprep.subr.bf16.mxu0 %v769
    %892 = vmatpush1.bf16.msra.mxu0 %v768
    %893 = vmatprep.subr.bf16.mxu0 %v765
    %894 = vmatpush1.bf16.msra.mxu0 %v764
    %895 = vmatprep.subr.bf16.mxu0 %v761
    %896 = vmatpush1.bf16.msra.mxu0 %v760
    %897 = vmatprep.subr.bf16.mxu0 0
    %898 = vmatpush2.bf16.msra.mxu0 0
    %899 = vmatprep.subr.bf16.mxu0 0
    %900 = vmatpush2.bf16.msra.mxu0 0
    %901 = vmatprep.subr.bf16.mxu0 0
    %902 = vmatpush2.bf16.msra.mxu0 0
    %903 = vmatprep.subr.bf16.mxu0 0
    %904 = vmatpush2.bf16.msra.mxu0 0
    %905 = vmatprep.subr.bf16.mxu0 %v805
    %906 = vmatpush2.bf16.msra.mxu0 %v804
    %907 = vmatprep.subr.bf16.mxu0 %v801
    %908 = vmatpush2.bf16.msra.mxu0 %v800
    %909 = vmatprep.subr.bf16.mxu0 %v797
    %910 = vmatpush2.bf16.msra.mxu0 %v796
    %911 = vmatprep.subr.bf16.mxu0 %v793
    %912 = vmatpush2.bf16.msra.mxu0 %v792
    %913 = vmatprep.mubr.bf16.mxu0 %v858
    %914 = vmatmul.mubr.bf16.gmra.mxu0 %v530
    %v915 = vpop.f32.mrf.mxu0
    %v916 = vadd.f32 %v599, %v915
    %v917 = vpop.f32.mrf.mxu0
    %v918 = vadd.f32 %v603, %v917
    %v919 = vpop.f32.mrf.mxu0
    %v920 = vadd.f32 %v599, %v919
    %v921 = vpop.f32.mrf.mxu0
    %v922 = vadd.f32 %v603, %v921
    %923 = vmatprep.mubr.bf16.mxu0 %v861
    %924 = vmatmul.mubr.bf16.gmra.mxu0 %v532
    %v925 = vpop.f32.mrf.mxu0
    %v926 = vadd.f32 %v599, %v925
    %v927 = vpop.f32.mrf.mxu0
    %v928 = vadd.f32 %v603, %v927
    %v929 = vpop.f32.mrf.mxu0
    %v930 = vadd.f32 %v599, %v929
    %v931 = vpop.f32.mrf.mxu0
    %v932 = vadd.f32 %v603, %v931
    %933 = vmatprep.mubr.bf16.mxu0 %v864
    %934 = vmatmul.mubr.bf16.gmra.mxu0 %v534
    %v935 = vpop.f32.mrf.mxu0
    %v936 = vadd.f32 %v599, %v935
    %v937 = vpop.f32.mrf.mxu0
    %v938 = vadd.f32 %v603, %v937
    %v939 = vpop.f32.mrf.mxu0
    %v940 = vadd.f32 %v599, %v939
    %v941 = vpop.f32.mrf.mxu0
    %v942 = vadd.f32 %v603, %v941
    %943 = vmatprep.mubr.bf16.mxu0 %v867
    %944 = vmatmul.mubr.bf16.gmra.mxu0 %v536
    %v945 = vpop.f32.mrf.mxu0
    %v946 = vadd.f32 %v599, %v945
    %v947 = vpop.f32.mrf.mxu0
    %v948 = vadd.f32 %v603, %v947
    %v949 = vpop.f32.mrf.mxu0
    %v950 = vadd.f32 %v599, %v949
    %v951 = vpop.f32.mrf.mxu0
    %v952 = vadd.f32 %v603, %v951
    %953 = vmatprep.mubr.bf16.mxu0 %v870
    %954 = vmatmul.mubr.bf16.gmra.mxu0 %v538
    %v955 = vpop.f32.mrf.mxu0
    %v956 = vadd.f32 %v599, %v955
    %v957 = vpop.f32.mrf.mxu0
    %v958 = vadd.f32 %v603, %v957
    %v959 = vpop.f32.mrf.mxu0
    %v960 = vadd.f32 %v599, %v959
    %v961 = vpop.f32.mrf.mxu0
    %v962 = vadd.f32 %v603, %v961
    %963 = vmatprep.mubr.bf16.mxu0 %v873
    %964 = vmatmul.mubr.bf16.gmra.mxu0 %v540
    %v965 = vpop.f32.mrf.mxu0
    %v966 = vadd.f32 %v599, %v965
    %v967 = vpop.f32.mrf.mxu0
    %v968 = vadd.f32 %v603, %v967
    %v969 = vpop.f32.mrf.mxu0
    %v970 = vadd.f32 %v599, %v969
    %v971 = vpop.f32.mrf.mxu0
    %v972 = vadd.f32 %v603, %v971
    %973 = vmatprep.mubr.bf16.mxu0 %v876
    %974 = vmatmul.mubr.bf16.gmra.mxu0 %v542
    %v975 = vpop.f32.mrf.mxu0
    %v976 = vadd.f32 %v599, %v975
    %v977 = vpop.f32.mrf.mxu0
    %v978 = vadd.f32 %v603, %v977
    %v979 = vpop.f32.mrf.mxu0
    %v980 = vadd.f32 %v599, %v979
    %v981 = vpop.f32.mrf.mxu0
    %v982 = vadd.f32 %v603, %v981
    %983 = vmatprep.mubr.bf16.mxu0 %v879
    %984 = vmatmul.mubr.bf16.gmra.mxu0 %v544
    %v985 = vpop.f32.mrf.mxu0
    %v986 = vadd.f32 %v599, %v985
    %v987 = vpop.f32.mrf.mxu0
    %v988 = vadd.f32 %v603, %v987
    %v989 = vpop.f32.mrf.mxu0
    %v990 = vadd.f32 %v599, %v989
    %v991 = vpop.f32.mrf.mxu0
    %v992 = vadd.f32 %v603, %v991
    %993 = vdwg.mxu0
    %994 = vmatprep.subr.bf16.mxu0 %v791
    %995 = vmatpush1.bf16.msra.mxu0 %v790
    %996 = vmatprep.subr.bf16.mxu0 %v787
    %997 = vmatpush1.bf16.msra.mxu0 %v786
    %998 = vmatprep.subr.bf16.mxu0 %v783
    %999 = vmatpush1.bf16.msra.mxu0 %v782
    %1000 = vmatprep.subr.bf16.mxu0 %v779
    %1001 = vmatpush1.bf16.msra.mxu0 %v778
    %1002 = vmatprep.subr.bf16.mxu0 %v775
    %1003 = vmatpush1.bf16.msra.mxu0 %v774
    %1004 = vmatprep.subr.bf16.mxu0 %v771
    %1005 = vmatpush1.bf16.msra.mxu0 %v770
    %1006 = vmatprep.subr.bf16.mxu0 %v767
    %1007 = vmatpush1.bf16.msra.mxu0 %v766
    %1008 = vmatprep.subr.bf16.mxu0 %v763
    %1009 = vmatpush1.bf16.msra.mxu0 %v762
    %1010 = vmatprep.subr.bf16.mxu0 0
    %1011 = vmatpush2.bf16.msra.mxu0 0
    %1012 = vmatprep.subr.bf16.mxu0 0
    %1013 = vmatpush2.bf16.msra.mxu0 0
    %1014 = vmatprep.subr.bf16.mxu0 0
    %1015 = vmatpush2.bf16.msra.mxu0 0
    %1016 = vmatprep.subr.bf16.mxu0 0
    %1017 = vmatpush2.bf16.msra.mxu0 0
    %1018 = vmatprep.subr.bf16.mxu0 %v807
    %1019 = vmatpush2.bf16.msra.mxu0 %v806
    %1020 = vmatprep.subr.bf16.mxu0 %v803
    %1021 = vmatpush2.bf16.msra.mxu0 %v802
    %1022 = vmatprep.subr.bf16.mxu0 %v799
    %1023 = vmatpush2.bf16.msra.mxu0 %v798
    %1024 = vmatprep.subr.bf16.mxu0 %v795
    %1025 = vmatpush2.bf16.msra.mxu0 %v794
    %1026 = vmatprep.mubr.bf16.mxu0 %v858
    %1027 = vmatmul.mubr.bf16.gmra.mxu0 %v530
    %v1028 = vpop.f32.mrf.mxu0
    %v1029 = vadd.f32 %v607, %v1028
    %v1030 = vpop.f32.mrf.mxu0
    %v1031 = vadd.f32 %v611, %v1030
    %v1032 = vpop.f32.mrf.mxu0
    %v1033 = vadd.f32 %v607, %v1032
    %v1034 = vpop.f32.mrf.mxu0
    %v1035 = vadd.f32 %v611, %v1034
    %1036 = vmatprep.mubr.bf16.mxu0 %v861
    %1037 = vmatmul.mubr.bf16.gmra.mxu0 %v532
    %v1038 = vpop.f32.mrf.mxu0
    %v1039 = vadd.f32 %v607, %v1038
    %v1040 = vpop.f32.mrf.mxu0
    %v1041 = vadd.f32 %v611, %v1040
    %v1042 = vpop.f32.mrf.mxu0
    %v1043 = vadd.f32 %v607, %v1042
    %v1044 = vpop.f32.mrf.mxu0
    %v1045 = vadd.f32 %v611, %v1044
    %1046 = vmatprep.mubr.bf16.mxu0 %v864
    %1047 = vmatmul.mubr.bf16.gmra.mxu0 %v534
    %v1048 = vpop.f32.mrf.mxu0
    %v1049 = vadd.f32 %v607, %v1048
    %v1050 = vpop.f32.mrf.mxu0
    %v1051 = vadd.f32 %v611, %v1050
    %v1052 = vpop.f32.mrf.mxu0
    %v1053 = vadd.f32 %v607, %v1052
    %v1054 = vpop.f32.mrf.mxu0
    %v1055 = vadd.f32 %v611, %v1054
    %1056 = vmatprep.mubr.bf16.mxu0 %v867
    %1057 = vmatmul.mubr.bf16.gmra.mxu0 %v536
    %v1058 = vpop.f32.mrf.mxu0
    %v1059 = vadd.f32 %v607, %v1058
    %v1060 = vpop.f32.mrf.mxu0
    %v1061 = vadd.f32 %v611, %v1060
    %v1062 = vpop.f32.mrf.mxu0
    %v1063 = vadd.f32 %v607, %v1062
    %v1064 = vpop.f32.mrf.mxu0
    %v1065 = vadd.f32 %v611, %v1064
    %1066 = vmatprep.mubr.bf16.mxu0 %v870
    %1067 = vmatmul.mubr.bf16.gmra.mxu0 %v538
    %v1068 = vpop.f32.mrf.mxu0
    %v1069 = vadd.f32 %v607, %v1068
    %v1070 = vpop.f32.mrf.mxu0
    %v1071 = vadd.f32 %v611, %v1070
    %v1072 = vpop.f32.mrf.mxu0
    %v1073 = vadd.f32 %v607, %v1072
    %v1074 = vpop.f32.mrf.mxu0
    %v1075 = vadd.f32 %v611, %v1074
    %1076 = vmatprep.mubr.bf16.mxu0 %v873
    %1077 = vmatmul.mubr.bf16.gmra.mxu0 %v540
    %v1078 = vpop.f32.mrf.mxu0
    %v1079 = vadd.f32 %v607, %v1078
    %v1080 = vpop.f32.mrf.mxu0
    %v1081 = vadd.f32 %v611, %v1080
    %v1082 = vpop.f32.mrf.mxu0
    %v1083 = vadd.f32 %v607, %v1082
    %v1084 = vpop.f32.mrf.mxu0
    %v1085 = vadd.f32 %v611, %v1084
    %1086 = vmatprep.mubr.bf16.mxu0 %v876
    %1087 = vmatmul.mubr.bf16.gmra.mxu0 %v542
    %v1088 = vpop.f32.mrf.mxu0
    %v1089 = vadd.f32 %v607, %v1088
    %v1090 = vpop.f32.mrf.mxu0
    %v1091 = vadd.f32 %v611, %v1090
    %v1092 = vpop.f32.mrf.mxu0
    %v1093 = vadd.f32 %v607, %v1092
    %v1094 = vpop.f32.mrf.mxu0
    %v1095 = vadd.f32 %v611, %v1094
    %1096 = vmatprep.mubr.bf16.mxu0 %v879
    %1097 = vmatmul.mubr.bf16.gmra.mxu0 %v544
    %v1098 = vpop.f32.mrf.mxu0
    %v1099 = vadd.f32 %v607, %v1098
    %v1100 = vpop.f32.mrf.mxu0
    %v1101 = vadd.f32 %v611, %v1100
    %v1102 = vpop.f32.mrf.mxu0
    %v1103 = vadd.f32 %v607, %v1102
    %v1104 = vpop.f32.mrf.mxu0
    %v1105 = vadd.f32 %v611, %v1104
    %1106 = vdwg.mxu0
    %v1107 = vmul.f32 %v916, 0.2
    %v1108 = vmul.f32 %v918, 0.2
    %v1109 = vmul.f32 %v1029, 0.2
    %v1110 = vmul.f32 %v1031, 0.2
    %v1111 = vmul.f32 %v920, 0.2
    %v1112 = vmul.f32 %v922, 0.2
    %v1113 = vmul.f32 %v1033, 0.2
    %v1114 = vmul.f32 %v1035, 0.2
    %v1115 = vmul.f32 %v926, 0.2
    %v1116 = vmul.f32 %v928, 0.2
    %v1117 = vmul.f32 %v1039, 0.2
    %v1118 = vmul.f32 %v1041, 0.2
    %v1119 = vmul.f32 %v930, 0.2
    %v1120 = vmul.f32 %v932, 0.2
    %v1121 = vmul.f32 %v1043, 0.2
    %v1122 = vmul.f32 %v1045, 0.2
    %v1123 = vmul.f32 %v936, 0.2
    %v1124 = vmul.f32 %v938, 0.2
    %v1125 = vmul.f32 %v1049, 0.2
    %v1126 = vmul.f32 %v1051, 0.2
    %v1127 = vmul.f32 %v940, 0.2
    %v1128 = vmul.f32 %v942, 0.2
    %v1129 = vmul.f32 %v1053, 0.2
    %v1130 = vmul.f32 %v1055, 0.2
    %v1131 = vmul.f32 %v946, 0.2
    %v1132 = vmul.f32 %v948, 0.2
    %v1133 = vmul.f32 %v1059, 0.2
    %v1134 = vmul.f32 %v1061, 0.2
    %v1135 = vmul.f32 %v950, 0.2
    %v1136 = vmul.f32 %v952, 0.2
    %v1137 = vmul.f32 %v1063, 0.2
    %v1138 = vmul.f32 %v1065, 0.2
    %v1139 = vmul.f32 %v956, 0.2
    %v1140 = vmul.f32 %v958, 0.2
    %v1141 = vmul.f32 %v1069, 0.2
    %v1142 = vmul.f32 %v1071, 0.2
    %v1143 = vmul.f32 %v960, 0.2
    %v1144 = vmul.f32 %v962, 0.2
    %v1145 = vmul.f32 %v1073, 0.2
    %v1146 = vmul.f32 %v1075, 0.2
    %v1147 = vmul.f32 %v966, 0.2
    %v1148 = vmul.f32 %v968, 0.2
    %v1149 = vmul.f32 %v1079, 0.2
    %v1150 = vmul.f32 %v1081, 0.2
    %v1151 = vmul.f32 %v970, 0.2
    %v1152 = vmul.f32 %v972, 0.2
    %v1153 = vmul.f32 %v1083, 0.2
    %v1154 = vmul.f32 %v1085, 0.2
    %v1155 = vmul.f32 %v976, 0.2
    %v1156 = vmul.f32 %v978, 0.2
    %v1157 = vmul.f32 %v1089, 0.2
    %v1158 = vmul.f32 %v1091, 0.2
    %v1159 = vmul.f32 %v980, 0.2
    %v1160 = vmul.f32 %v982, 0.2
    %v1161 = vmul.f32 %v1093, 0.2
    %v1162 = vmul.f32 %v1095, 0.2
    %v1163 = vmul.f32 %v986, 0.2
    %v1164 = vmul.f32 %v988, 0.2
    %v1165 = vmul.f32 %v1099, 0.2
    %v1166 = vmul.f32 %v1101, 0.2
    %v1167 = vmul.f32 %v990, 0.2
    %v1168 = vmul.f32 %v992, 0.2
    %v1169 = vmul.f32 %v1103, 0.2
    %v1170 = vmul.f32 %v1105, 0.2
    %v1171 = vmax.f32 %v916, %v1107
    %v1172 = vmax.f32 %v918, %v1108
    %v1173 = vmax.f32 %v1029, %v1109
    %v1174 = vmax.f32 %v1031, %v1110
    %v1175 = vmax.f32 %v920, %v1111
    %v1176 = vmax.f32 %v922, %v1112
    %v1177 = vmax.f32 %v1033, %v1113
    %v1178 = vmax.f32 %v1035, %v1114
    %v1179 = vmax.f32 %v926, %v1115
    %v1180 = vmax.f32 %v928, %v1116
    %v1181 = vmax.f32 %v1039, %v1117
    %v1182 = vmax.f32 %v1041, %v1118
    %v1183 = vmax.f32 %v930, %v1119
    %v1184 = vmax.f32 %v932, %v1120
    %v1185 = vmax.f32 %v1043, %v1121
    %v1186 = vmax.f32 %v1045, %v1122
    %v1187 = vmax.f32 %v936, %v1123
    %v1188 = vmax.f32 %v938, %v1124
    %v1189 = vmax.f32 %v1049, %v1125
    %v1190 = vmax.f32 %v1051, %v1126
    %v1191 = vmax.f32 %v940, %v1127
    %v1192 = vmax.f32 %v942, %v1128
    %v1193 = vmax.f32 %v1053, %v1129
    %v1194 = vmax.f32 %v1055, %v1130
    %v1195 = vmax.f32 %v946, %v1131
    %v1196 = vmax.f32 %v948, %v1132
    %v1197 = vmax.f32 %v1059, %v1133
    %v1198 = vmax.f32 %v1061, %v1134
    %v1199 = vmax.f32 %v950, %v1135
    %v1200 = vmax.f32 %v952, %v1136
    %v1201 = vmax.f32 %v1063, %v1137
    %v1202 = vmax.f32 %v1065, %v1138
    %v1203 = vmax.f32 %v956, %v1139
    %v1204 = vmax.f32 %v958, %v1140
    %v1205 = vmax.f32 %v1069, %v1141
    %v1206 = vmax.f32 %v1071, %v1142
    %v1207 = vmax.f32 %v960, %v1143
    %v1208 = vmax.f32 %v962, %v1144
    %v1209 = vmax.f32 %v1073, %v1145
    %v1210 = vmax.f32 %v1075, %v1146
    %v1211 = vmax.f32 %v966, %v1147
    %v1212 = vmax.f32 %v968, %v1148
    %v1213 = vmax.f32 %v1079, %v1149
    %v1214 = vmax.f32 %v1081, %v1150
    %v1215 = vmax.f32 %v970, %v1151
    %v1216 = vmax.f32 %v972, %v1152
    %v1217 = vmax.f32 %v1083, %v1153
    %v1218 = vmax.f32 %v1085, %v1154
    %v1219 = vmax.f32 %v976, %v1155
    %v1220 = vmax.f32 %v978, %v1156
    %v1221 = vmax.f32 %v1089, %v1157
    %v1222 = vmax.f32 %v1091, %v1158
    %v1223 = vmax.f32 %v980, %v1159
    %v1224 = vmax.f32 %v982, %v1160
    %v1225 = vmax.f32 %v1093, %v1161
    %v1226 = vmax.f32 %v1095, %v1162
    %v1227 = vmax.f32 %v986, %v1163
    %v1228 = vmax.f32 %v988, %v1164
    %v1229 = vmax.f32 %v1099, %v1165
    %v1230 = vmax.f32 %v1101, %v1166
    %v1231 = vmax.f32 %v990, %v1167
    %v1232 = vmax.f32 %v992, %v1168
    %v1233 = vmax.f32 %v1103, %v1169
    %v1234 = vmax.f32 %v1105, %v1170
    %v1235 = vpack.c.bf16 %v1175, %v1171
    %v1236 = vpack.c.bf16 %v1176, %v1172
    %v1237 = vpack.c.bf16 %v1177, %v1173
    %v1238 = vpack.c.bf16 %v1178, %v1174
    %v1239 = vpack.c.bf16 %v1183, %v1179
    %v1240 = vpack.c.bf16 %v1184, %v1180
    %v1241 = vpack.c.bf16 %v1185, %v1181
    %v1242 = vpack.c.bf16 %v1186, %v1182
    %v1243 = vpack.c.bf16 %v1191, %v1187
    %v1244 = vpack.c.bf16 %v1192, %v1188
    %v1245 = vpack.c.bf16 %v1193, %v1189
    %v1246 = vpack.c.bf16 %v1194, %v1190
    %v1247 = vpack.c.bf16 %v1199, %v1195
    %v1248 = vpack.c.bf16 %v1200, %v1196
    %v1249 = vpack.c.bf16 %v1201, %v1197
    %v1250 = vpack.c.bf16 %v1202, %v1198
    %v1251 = vpack.c.bf16 %v1207, %v1203
    %v1252 = vpack.c.bf16 %v1208, %v1204
    %v1253 = vpack.c.bf16 %v1209, %v1205
    %v1254 = vpack.c.bf16 %v1210, %v1206
    %v1255 = vpack.c.bf16 %v1215, %v1211
    %v1256 = vpack.c.bf16 %v1216, %v1212
    %v1257 = vpack.c.bf16 %v1217, %v1213
    %v1258 = vpack.c.bf16 %v1218, %v1214
    %v1259 = vpack.c.bf16 %v1223, %v1219
    %v1260 = vpack.c.bf16 %v1224, %v1220
    %v1261 = vpack.c.bf16 %v1225, %v1221
    %v1262 = vpack.c.bf16 %v1226, %v1222
    %v1263 = vpack.c.bf16 %v1231, %v1227
    %v1264 = vpack.c.bf16 %v1232, %v1228
    %v1265 = vpack.c.bf16 %v1233, %v1229
    %v1266 = vpack.c.bf16 %v1234, %v1230
    %v1267 = vld [vmem:[#allocation8] sm:$0xff]
    %v1268 = vld [vmem:[#allocation8 + $0x8] sm:$0xff]
    %v1269 = vld [vmem:[#allocation8 + $0x10] sm:$0xff]
    %v1270 = vld [vmem:[#allocation8 + $0x18] sm:$0xff]
    %v1271 = vld [vmem:[#allocation8 + $0x20] sm:$0xff]
    %v1272 = vld [vmem:[#allocation8 + $0x28] sm:$0xff]
    %v1273 = vld [vmem:[#allocation8 + $0x30] sm:$0xff]
    %v1274 = vld [vmem:[#allocation8 + $0x38] sm:$0xff]
    %v1275 = vld [vmem:[#allocation8 + $0x40] sm:$0xff]
    %v1276 = vld [vmem:[#allocation8 + $0x48] sm:$0xff]
    %v1277 = vld [vmem:[#allocation8 + $0x50] sm:$0xff]
    %v1278 = vld [vmem:[#allocation8 + $0x58] sm:$0xff]
    %v1279 = vld [vmem:[#allocation8 + $0x60] sm:$0xff]
    %v1280 = vld [vmem:[#allocation8 + $0x68] sm:$0xff]
    %v1281 = vld [vmem:[#allocation8 + $0x70] sm:$0xff]
    %v1282 = vld [vmem:[#allocation8 + $0x78] sm:$0xff]
    %v1283 = vld [vmem:[#allocation8 + $0x80] sm:$0xff]
    %v1284 = vld [vmem:[#allocation8 + $0x88] sm:$0xff]
    %v1285 = vld [vmem:[#allocation8 + $0x90] sm:$0xff]
    %v1286 = vld [vmem:[#allocation8 + $0x98] sm:$0xff]
    %v1287 = vld [vmem:[#allocation8 + $0xa0] sm:$0xff]
    %v1288 = vld [vmem:[#allocation8 + $0xa8] sm:$0xff]
    %v1289 = vld [vmem:[#allocation8 + $0xb0] sm:$0xff]
    %v1290 = vld [vmem:[#allocation8 + $0xb8] sm:$0xff]
    %v1291 = vld [vmem:[#allocation8 + $0xc0] sm:$0xff]
    %v1292 = vld [vmem:[#allocation8 + $0xc8] sm:$0xff]
    %v1293 = vld [vmem:[#allocation8 + $0xd0] sm:$0xff]
    %v1294 = vld [vmem:[#allocation8 + $0xd8] sm:$0xff]
    %v1295 = vld [vmem:[#allocation8 + $0xe0] sm:$0xff]
    %v1296 = vld [vmem:[#allocation8 + $0xe8] sm:$0xff]
    %v1297 = vld [vmem:[#allocation8 + $0xf0] sm:$0xff]
    %v1298 = vld [vmem:[#allocation8 + $0xf8] sm:$0xff]
    %v1299 = vld [vmem:[#allocation8 + $0x100] sm:$0xff]
    %v1300 = vld [vmem:[#allocation8 + $0x108] sm:$0xff]
    %v1301 = vld [vmem:[#allocation8 + $0x110] sm:$0xff]
    %v1302 = vld [vmem:[#allocation8 + $0x118] sm:$0xff]
    %v1303 = vld [vmem:[#allocation8 + $0x120] sm:$0xff]
    %v1304 = vld [vmem:[#allocation8 + $0x128] sm:$0xff]
    %v1305 = vld [vmem:[#allocation8 + $0x130] sm:$0xff]
    %v1306 = vld [vmem:[#allocation8 + $0x138] sm:$0xff]
    %v1307 = vld [vmem:[#allocation8 + $0x140] sm:$0xff]
    %v1308 = vld [vmem:[#allocation8 + $0x148] sm:$0xff]
    %v1309 = vld [vmem:[#allocation8 + $0x150] sm:$0xff]
    %v1310 = vld [vmem:[#allocation8 + $0x158] sm:$0xff]
    %v1311 = vld [vmem:[#allocation8 + $0x160] sm:$0xff]
    %v1312 = vld [vmem:[#allocation8 + $0x168] sm:$0xff]
    %v1313 = vld [vmem:[#allocation8 + $0x170] sm:$0xff]
    %v1314 = vld [vmem:[#allocation8 + $0x178] sm:$0xff]
    %v1315 = vld [vmem:[#allocation8 + $0x180] sm:$0xff]
    %v1316 = vld [vmem:[#allocation8 + $0x188] sm:$0xff]
    %v1317 = vld [vmem:[#allocation8 + $0x190] sm:$0xff]
    %v1318 = vld [vmem:[#allocation8 + $0x198] sm:$0xff]
    %v1319 = vld [vmem:[#allocation8 + $0x1a0] sm:$0xff]
    %v1320 = vld [vmem:[#allocation8 + $0x1a8] sm:$0xff]
    %v1321 = vld [vmem:[#allocation8 + $0x1b0] sm:$0xff]
    %v1322 = vld [vmem:[#allocation8 + $0x1b8] sm:$0xff]
    %v1323 = vld [vmem:[#allocation8 + $0x1c0] sm:$0xff]
    %v1324 = vld [vmem:[#allocation8 + $0x1c8] sm:$0xff]
    %v1325 = vld [vmem:[#allocation8 + $0x1d0] sm:$0xff]
    %v1326 = vld [vmem:[#allocation8 + $0x1d8] sm:$0xff]
    %v1327 = vld [vmem:[#allocation8 + $0x1e0] sm:$0xff]
    %v1328 = vld [vmem:[#allocation8 + $0x1e8] sm:$0xff]
    %v1329 = vld [vmem:[#allocation8 + $0x1f0] sm:$0xff]
    %v1330 = vld [vmem:[#allocation8 + $0x1f8] sm:$0xff]
    %v1331 = vld [vmem:[%s4] sm:$0x3]
    %v1333 = vlaneseq
    %v1334 = vshrl.u32 %v1333, 7
    %v1335 = vsub.s32 0, %v1334
    %v1336 = vrot.slane %v1331, %v1335
    %v1337 = vlaneseq
    %v1338 = vshrl.u32 %v1337, 7
    %v1339 = vsub.s32 1, %v1338
    %v1340 = vrot.slane %v1331, %v1339
    %v1407 = vunpack.c.l.b16 %v1267
    %v1408 = vunpack.c.h.b16 %v1267
    %v1409 = vunpack.c.l.b16 %v1268
    %v1410 = vunpack.c.h.b16 %v1268
    %v1411 = vunpack.c.l.b16 %v1269
    %v1412 = vunpack.c.h.b16 %v1269
    %v1413 = vunpack.c.l.b16 %v1270
    %v1414 = vunpack.c.h.b16 %v1270
    %v1415 = vunpack.c.l.b16 %v1271
    %v1416 = vunpack.c.h.b16 %v1271
    %v1417 = vunpack.c.l.b16 %v1272
    %v1418 = vunpack.c.h.b16 %v1272
    %v1419 = vunpack.c.l.b16 %v1273
    %v1420 = vunpack.c.h.b16 %v1273
    %v1421 = vunpack.c.l.b16 %v1274
    %v1422 = vunpack.c.h.b16 %v1274
    %v1423 = vunpack.c.l.b16 %v1275
    %v1424 = vunpack.c.h.b16 %v1275
    %v1425 = vunpack.c.l.b16 %v1276
    %v1426 = vunpack.c.h.b16 %v1276
    %v1427 = vunpack.c.l.b16 %v1277
    %v1428 = vunpack.c.h.b16 %v1277
    %v1429 = vunpack.c.l.b16 %v1278
    %v1430 = vunpack.c.h.b16 %v1278
    %v1431 = vunpack.c.l.b16 %v1279
    %v1432 = vunpack.c.h.b16 %v1279
    %v1433 = vunpack.c.l.b16 %v1280
    %v1434 = vunpack.c.h.b16 %v1280
    %v1435 = vunpack.c.l.b16 %v1281
    %v1436 = vunpack.c.h.b16 %v1281
    %v1437 = vunpack.c.l.b16 %v1282
    %v1438 = vunpack.c.h.b16 %v1282
    %v1439 = vunpack.c.l.b16 %v1283
    %v1440 = vunpack.c.h.b16 %v1283
    %v1441 = vunpack.c.l.b16 %v1284
    %v1442 = vunpack.c.h.b16 %v1284
    %v1443 = vunpack.c.l.b16 %v1285
    %v1444 = vunpack.c.h.b16 %v1285
    %v1445 = vunpack.c.l.b16 %v1286
    %v1446 = vunpack.c.h.b16 %v1286
    %v1447 = vunpack.c.l.b16 %v1287
    %v1448 = vunpack.c.h.b16 %v1287
    %v1449 = vunpack.c.l.b16 %v1288
    %v1450 = vunpack.c.h.b16 %v1288
    %v1451 = vunpack.c.l.b16 %v1289
    %v1452 = vunpack.c.h.b16 %v1289
    %v1453 = vunpack.c.l.b16 %v1290
    %v1454 = vunpack.c.h.b16 %v1290
    %v1455 = vunpack.c.l.b16 %v1291
    %v1456 = vunpack.c.h.b16 %v1291
    %v1457 = vunpack.c.l.b16 %v1292
    %v1458 = vunpack.c.h.b16 %v1292
    %v1459 = vunpack.c.l.b16 %v1293
    %v1460 = vunpack.c.h.b16 %v1293
    %v1461 = vunpack.c.l.b16 %v1294
    %v1462 = vunpack.c.h.b16 %v1294
    %v1463 = vunpack.c.l.b16 %v1295
    %v1464 = vunpack.c.h.b16 %v1295
    %v1465 = vunpack.c.l.b16 %v1296
    %v1466 = vunpack.c.h.b16 %v1296
    %v1467 = vunpack.c.l.b16 %v1297
    %v1468 = vunpack.c.h.b16 %v1297
    %v1469 = vunpack.c.l.b16 %v1298
    %v1470 = vunpack.c.h.b16 %v1298
    %v1471 = vunpack.c.l.b16 %v1299
    %v1472 = vunpack.c.h.b16 %v1299
    %v1473 = vunpack.c.l.b16 %v1300
    %v1474 = vunpack.c.h.b16 %v1300
    %v1475 = vunpack.c.l.b16 %v1301
    %v1476 = vunpack.c.h.b16 %v1301
    %v1477 = vunpack.c.l.b16 %v1302
    %v1478 = vunpack.c.h.b16 %v1302
    %v1479 = vunpack.c.l.b16 %v1303
    %v1480 = vunpack.c.h.b16 %v1303
    %v1481 = vunpack.c.l.b16 %v1304
    %v1482 = vunpack.c.h.b16 %v1304
    %v1483 = vunpack.c.l.b16 %v1305
    %v1484 = vunpack.c.h.b16 %v1305
    %v1485 = vunpack.c.l.b16 %v1306
    %v1486 = vunpack.c.h.b16 %v1306
    %v1487 = vunpack.c.l.b16 %v1307
    %v1488 = vunpack.c.h.b16 %v1307
    %v1489 = vunpack.c.l.b16 %v1308
    %v1490 = vunpack.c.h.b16 %v1308
    %v1491 = vunpack.c.l.b16 %v1309
    %v1492 = vunpack.c.h.b16 %v1309
    %v1493 = vunpack.c.l.b16 %v1310
    %v1494 = vunpack.c.h.b16 %v1310
    %v1495 = vunpack.c.l.b16 %v1311
    %v1496 = vunpack.c.h.b16 %v1311
    %v1497 = vunpack.c.l.b16 %v1312
    %v1498 = vunpack.c.h.b16 %v1312
    %v1499 = vunpack.c.l.b16 %v1313
    %v1500 = vunpack.c.h.b16 %v1313
    %v1501 = vunpack.c.l.b16 %v1314
    %v1502 = vunpack.c.h.b16 %v1314
    %v1503 = vunpack.c.l.b16 %v1315
    %v1504 = vunpack.c.h.b16 %v1315
    %v1505 = vunpack.c.l.b16 %v1316
    %v1506 = vunpack.c.h.b16 %v1316
    %v1507 = vunpack.c.l.b16 %v1317
    %v1508 = vunpack.c.h.b16 %v1317
    %v1509 = vunpack.c.l.b16 %v1318
    %v1510 = vunpack.c.h.b16 %v1318
    %v1511 = vunpack.c.l.b16 %v1319
    %v1512 = vunpack.c.h.b16 %v1319
    %v1513 = vunpack.c.l.b16 %v1320
    %v1514 = vunpack.c.h.b16 %v1320
    %v1515 = vunpack.c.l.b16 %v1321
    %v1516 = vunpack.c.h.b16 %v1321
    %v1517 = vunpack.c.l.b16 %v1322
    %v1518 = vunpack.c.h.b16 %v1322
    %v1519 = vunpack.c.l.b16 %v1323
    %v1520 = vunpack.c.h.b16 %v1323
    %v1521 = vunpack.c.l.b16 %v1324
    %v1522 = vunpack.c.h.b16 %v1324
    %v1523 = vunpack.c.l.b16 %v1325
    %v1524 = vunpack.c.h.b16 %v1325
    %v1525 = vunpack.c.l.b16 %v1326
    %v1526 = vunpack.c.h.b16 %v1326
    %v1527 = vunpack.c.l.b16 %v1327
    %v1528 = vunpack.c.h.b16 %v1327
    %v1529 = vunpack.c.l.b16 %v1328
    %v1530 = vunpack.c.h.b16 %v1328
    %v1531 = vunpack.c.l.b16 %v1329
    %v1532 = vunpack.c.h.b16 %v1329
    %v1533 = vunpack.c.l.b16 %v1330
    %v1534 = vunpack.c.h.b16 %v1330
    %v1535 = vpack.c.b16 %v1409, %v1407
    %v1536 = vpack.c.b16 %v1410, %v1408
    %v1537 = vpack.c.b16 %v1413, %v1411
    %v1538 = vpack.c.b16 %v1414, %v1412
    %v1539 = vpack.c.b16 %v1417, %v1415
    %v1540 = vpack.c.b16 %v1418, %v1416
    %v1541 = vpack.c.b16 %v1421, %v1419
    %v1542 = vpack.c.b16 %v1422, %v1420
    %v1543 = vpack.c.b16 %v1425, %v1423
    %v1544 = vpack.c.b16 %v1426, %v1424
    %v1545 = vpack.c.b16 %v1429, %v1427
    %v1546 = vpack.c.b16 %v1430, %v1428
    %v1547 = vpack.c.b16 %v1433, %v1431
    %v1548 = vpack.c.b16 %v1434, %v1432
    %v1549 = vpack.c.b16 %v1437, %v1435
    %v1550 = vpack.c.b16 %v1438, %v1436
    %v1551 = vpack.c.b16 %v1441, %v1439
    %v1552 = vpack.c.b16 %v1442, %v1440
    %v1553 = vpack.c.b16 %v1445, %v1443
    %v1554 = vpack.c.b16 %v1446, %v1444
    %v1555 = vpack.c.b16 %v1449, %v1447
    %v1556 = vpack.c.b16 %v1450, %v1448
    %v1557 = vpack.c.b16 %v1453, %v1451
    %v1558 = vpack.c.b16 %v1454, %v1452
    %v1559 = vpack.c.b16 %v1457, %v1455
    %v1560 = vpack.c.b16 %v1458, %v1456
    %v1561 = vpack.c.b16 %v1461, %v1459
    %v1562 = vpack.c.b16 %v1462, %v1460
    %v1563 = vpack.c.b16 %v1465, %v1463
    %v1564 = vpack.c.b16 %v1466, %v1464
    %v1565 = vpack.c.b16 %v1469, %v1467
    %v1566 = vpack.c.b16 %v1470, %v1468
    %v1567 = vpack.c.b16 %v1473, %v1471
    %v1568 = vpack.c.b16 %v1474, %v1472
    %v1569 = vpack.c.b16 %v1477, %v1475
    %v1570 = vpack.c.b16 %v1478, %v1476
    %v1571 = vpack.c.b16 %v1481, %v1479
    %v1572 = vpack.c.b16 %v1482, %v1480
    %v1573 = vpack.c.b16 %v1485, %v1483
    %v1574 = vpack.c.b16 %v1486, %v1484
    %v1575 = vpack.c.b16 %v1489, %v1487
    %v1576 = vpack.c.b16 %v1490, %v1488
    %v1577 = vpack.c.b16 %v1493, %v1491
    %v1578 = vpack.c.b16 %v1494, %v1492
    %v1579 = vpack.c.b16 %v1497, %v1495
    %v1580 = vpack.c.b16 %v1498, %v1496
    %v1581 = vpack.c.b16 %v1501, %v1499
    %v1582 = vpack.c.b16 %v1502, %v1500
    %v1583 = vpack.c.b16 %v1505, %v1503
    %v1584 = vpack.c.b16 %v1506, %v1504
    %v1585 = vpack.c.b16 %v1509, %v1507
    %v1586 = vpack.c.b16 %v1510, %v1508
    %v1587 = vpack.c.b16 %v1513, %v1511
    %v1588 = vpack.c.b16 %v1514, %v1512
    %v1589 = vpack.c.b16 %v1517, %v1515
    %v1590 = vpack.c.b16 %v1518, %v1516
    %v1591 = vpack.c.b16 %v1521, %v1519
    %v1592 = vpack.c.b16 %v1522, %v1520
    %v1593 = vpack.c.b16 %v1525, %v1523
    %v1594 = vpack.c.b16 %v1526, %v1524
    %v1595 = vpack.c.b16 %v1529, %v1527
    %v1596 = vpack.c.b16 %v1530, %v1528
    %v1597 = vpack.c.b16 %v1533, %v1531
    %v1598 = vpack.c.b16 %v1534, %v1532
    %1663 = vmatprep.subr.bf16.mxu0 %v1550
    %1664 = vmatpush1.bf16.msra.mxu0 %v1549
    %1665 = vmatprep.subr.bf16.mxu0 %v1548
    %1666 = vmatpush1.bf16.msra.mxu0 %v1547
    %1667 = vmatprep.subr.bf16.mxu0 %v1546
    %1668 = vmatpush1.bf16.msra.mxu0 %v1545
    %1669 = vmatprep.subr.bf16.mxu0 %v1544
    %1670 = vmatpush1.bf16.msra.mxu0 %v1543
    %1671 = vmatprep.subr.bf16.mxu0 %v1542
    %1672 = vmatpush1.bf16.msra.mxu0 %v1541
    %1673 = vmatprep.subr.bf16.mxu0 %v1540
    %1674 = vmatpush1.bf16.msra.mxu0 %v1539
    %1675 = vmatprep.subr.bf16.mxu0 %v1538
    %1676 = vmatpush1.bf16.msra.mxu0 %v1537
    %1677 = vmatprep.subr.bf16.mxu0 %v1536
    %1678 = vmatpush1.bf16.msra.mxu0 %v1535
    %1679 = vmatprep.subr.bf16.mxu0 %v1566
    %1680 = vmatpush2.bf16.msra.mxu0 %v1565
    %1681 = vmatprep.subr.bf16.mxu0 %v1564
    %1682 = vmatpush2.bf16.msra.mxu0 %v1563
    %1683 = vmatprep.subr.bf16.mxu0 %v1562
    %1684 = vmatpush2.bf16.msra.mxu0 %v1561
    %1685 = vmatprep.subr.bf16.mxu0 %v1560
    %1686 = vmatpush2.bf16.msra.mxu0 %v1559
    %1687 = vmatprep.subr.bf16.mxu0 %v1558
    %1688 = vmatpush2.bf16.msra.mxu0 %v1557
    %1689 = vmatprep.subr.bf16.mxu0 %v1556
    %1690 = vmatpush2.bf16.msra.mxu0 %v1555
    %1691 = vmatprep.subr.bf16.mxu0 %v1554
    %1692 = vmatpush2.bf16.msra.mxu0 %v1553
    %1693 = vmatprep.subr.bf16.mxu0 %v1552
    %1694 = vmatpush2.bf16.msra.mxu0 %v1551
    %1695 = vmatprep.mubr.bf16.mxu0 %v1236
    %1696 = vmatmul.mubr.bf16.gmra.mxu0 %v1235
    %v1697 = vpop.f32.mrf.mxu0
    %v1698 = vadd.f32 %v1336, %v1697
    %v1699 = vpop.f32.mrf.mxu0
    %v1700 = vadd.f32 %v1340, %v1699
    %v1701 = vpop.f32.mrf.mxu0
    %v1702 = vadd.f32 %v1336, %v1701
    %v1703 = vpop.f32.mrf.mxu0
    %v1704 = vadd.f32 %v1340, %v1703
    %1705 = vmatprep.mubr.bf16.mxu0 %v1240
    %1706 = vmatmul.mubr.bf16.gmra.mxu0 %v1239
    %v1707 = vpop.f32.mrf.mxu0
    %v1708 = vadd.f32 %v1336, %v1707
    %v1709 = vpop.f32.mrf.mxu0
    %v1710 = vadd.f32 %v1340, %v1709
    %v1711 = vpop.f32.mrf.mxu0
    %v1712 = vadd.f32 %v1336, %v1711
    %v1713 = vpop.f32.mrf.mxu0
    %v1714 = vadd.f32 %v1340, %v1713
    %1715 = vmatprep.mubr.bf16.mxu0 %v1244
    %1716 = vmatmul.mubr.bf16.gmra.mxu0 %v1243
    %v1717 = vpop.f32.mrf.mxu0
    %v1718 = vadd.f32 %v1336, %v1717
    %v1719 = vpop.f32.mrf.mxu0
    %v1720 = vadd.f32 %v1340, %v1719
    %v1721 = vpop.f32.mrf.mxu0
    %v1722 = vadd.f32 %v1336, %v1721
    %v1723 = vpop.f32.mrf.mxu0
    %v1724 = vadd.f32 %v1340, %v1723
    %1725 = vmatprep.mubr.bf16.mxu0 %v1248
    %1726 = vmatmul.mubr.bf16.gmra.mxu0 %v1247
    %v1727 = vpop.f32.mrf.mxu0
    %v1728 = vadd.f32 %v1336, %v1727
    %v1729 = vpop.f32.mrf.mxu0
    %v1730 = vadd.f32 %v1340, %v1729
    %v1731 = vpop.f32.mrf.mxu0
    %v1732 = vadd.f32 %v1336, %v1731
    %v1733 = vpop.f32.mrf.mxu0
    %v1734 = vadd.f32 %v1340, %v1733
    %1735 = vmatprep.mubr.bf16.mxu0 %v1252
    %1736 = vmatmul.mubr.bf16.gmra.mxu0 %v1251
    %v1737 = vpop.f32.mrf.mxu0
    %v1738 = vadd.f32 %v1336, %v1737
    %v1739 = vpop.f32.mrf.mxu0
    %v1740 = vadd.f32 %v1340, %v1739
    %v1741 = vpop.f32.mrf.mxu0
    %v1742 = vadd.f32 %v1336, %v1741
    %v1743 = vpop.f32.mrf.mxu0
    %v1744 = vadd.f32 %v1340, %v1743
    %1745 = vmatprep.mubr.bf16.mxu0 %v1256
    %1746 = vmatmul.mubr.bf16.gmra.mxu0 %v1255
    %v1747 = vpop.f32.mrf.mxu0
    %v1748 = vadd.f32 %v1336, %v1747
    %v1749 = vpop.f32.mrf.mxu0
    %v1750 = vadd.f32 %v1340, %v1749
    %v1751 = vpop.f32.mrf.mxu0
    %v1752 = vadd.f32 %v1336, %v1751
    %v1753 = vpop.f32.mrf.mxu0
    %v1754 = vadd.f32 %v1340, %v1753
    %1755 = vmatprep.mubr.bf16.mxu0 %v1260
    %1756 = vmatmul.mubr.bf16.gmra.mxu0 %v1259
    %v1757 = vpop.f32.mrf.mxu0
    %v1758 = vadd.f32 %v1336, %v1757
    %v1759 = vpop.f32.mrf.mxu0
    %v1760 = vadd.f32 %v1340, %v1759
    %v1761 = vpop.f32.mrf.mxu0
    %v1762 = vadd.f32 %v1336, %v1761
    %v1763 = vpop.f32.mrf.mxu0
    %v1764 = vadd.f32 %v1340, %v1763
    %1765 = vmatprep.mubr.bf16.mxu0 %v1264
    %1766 = vmatmul.mubr.bf16.gmra.mxu0 %v1263
    %v1767 = vpop.f32.mrf.mxu0
    %v1768 = vadd.f32 %v1336, %v1767
    %v1769 = vpop.f32.mrf.mxu0
    %v1770 = vadd.f32 %v1340, %v1769
    %v1771 = vpop.f32.mrf.mxu0
    %v1772 = vadd.f32 %v1336, %v1771
    %v1773 = vpop.f32.mrf.mxu0
    %v1774 = vadd.f32 %v1340, %v1773
    %1775 = vdwg.mxu0
    %1776 = vmatprep.subr.bf16.mxu0 %v1582
    %1777 = vmatpush1.bf16.msra.mxu0 %v1581
    %1778 = vmatprep.subr.bf16.mxu0 %v1580
    %1779 = vmatpush1.bf16.msra.mxu0 %v1579
    %1780 = vmatprep.subr.bf16.mxu0 %v1578
    %1781 = vmatpush1.bf16.msra.mxu0 %v1577
    %1782 = vmatprep.subr.bf16.mxu0 %v1576
    %1783 = vmatpush1.bf16.msra.mxu0 %v1575
    %1784 = vmatprep.subr.bf16.mxu0 %v1574
    %1785 = vmatpush1.bf16.msra.mxu0 %v1573
    %1786 = vmatprep.subr.bf16.mxu0 %v1572
    %1787 = vmatpush1.bf16.msra.mxu0 %v1571
    %1788 = vmatprep.subr.bf16.mxu0 %v1570
    %1789 = vmatpush1.bf16.msra.mxu0 %v1569
    %1790 = vmatprep.subr.bf16.mxu0 %v1568
    %1791 = vmatpush1.bf16.msra.mxu0 %v1567
    %1792 = vmatprep.subr.bf16.mxu0 %v1598
    %1793 = vmatpush2.bf16.msra.mxu0 %v1597
    %1794 = vmatprep.subr.bf16.mxu0 %v1596
    %1795 = vmatpush2.bf16.msra.mxu0 %v1595
    %1796 = vmatprep.subr.bf16.mxu0 %v1594
    %1797 = vmatpush2.bf16.msra.mxu0 %v1593
    %1798 = vmatprep.subr.bf16.mxu0 %v1592
    %1799 = vmatpush2.bf16.msra.mxu0 %v1591
    %1800 = vmatprep.subr.bf16.mxu0 %v1590
    %1801 = vmatpush2.bf16.msra.mxu0 %v1589
    %1802 = vmatprep.subr.bf16.mxu0 %v1588
    %1803 = vmatpush2.bf16.msra.mxu0 %v1587
    %1804 = vmatprep.subr.bf16.mxu0 %v1586
    %1805 = vmatpush2.bf16.msra.mxu0 %v1585
    %1806 = vmatprep.subr.bf16.mxu0 %v1584
    %1807 = vmatpush2.bf16.msra.mxu0 %v1583
    %1808 = vmatprep.mubr.bf16.mxu0 %v1238
    %1809 = vmatmul.mubr.bf16.gmra.mxu0 %v1237
    %v1810 = vpop.f32.mrf.mxu0
    %v1811 = vadd.f32 %v1698, %v1810
    %v1812 = vpop.f32.mrf.mxu0
    %v1813 = vadd.f32 %v1700, %v1812
    %v1814 = vpop.f32.mrf.mxu0
    %v1815 = vadd.f32 %v1702, %v1814
    %v1816 = vpop.f32.mrf.mxu0
    %v1817 = vadd.f32 %v1704, %v1816
    %1818 = vmatprep.mubr.bf16.mxu0 %v1242
    %1819 = vmatmul.mubr.bf16.gmra.mxu0 %v1241
    %v1820 = vpop.f32.mrf.mxu0
    %v1821 = vadd.f32 %v1708, %v1820
    %v1822 = vpop.f32.mrf.mxu0
    %v1823 = vadd.f32 %v1710, %v1822
    %v1824 = vpop.f32.mrf.mxu0
    %v1825 = vadd.f32 %v1712, %v1824
    %v1826 = vpop.f32.mrf.mxu0
    %v1827 = vadd.f32 %v1714, %v1826
    %1828 = vmatprep.mubr.bf16.mxu0 %v1246
    %1829 = vmatmul.mubr.bf16.gmra.mxu0 %v1245
    %v1830 = vpop.f32.mrf.mxu0
    %v1831 = vadd.f32 %v1718, %v1830
    %v1832 = vpop.f32.mrf.mxu0
    %v1833 = vadd.f32 %v1720, %v1832
    %v1834 = vpop.f32.mrf.mxu0
    %v1835 = vadd.f32 %v1722, %v1834
    %v1836 = vpop.f32.mrf.mxu0
    %v1837 = vadd.f32 %v1724, %v1836
    %1838 = vmatprep.mubr.bf16.mxu0 %v1250
    %1839 = vmatmul.mubr.bf16.gmra.mxu0 %v1249
    %v1840 = vpop.f32.mrf.mxu0
    %v1841 = vadd.f32 %v1728, %v1840
    %v1842 = vpop.f32.mrf.mxu0
    %v1843 = vadd.f32 %v1730, %v1842
    %v1844 = vpop.f32.mrf.mxu0
    %v1845 = vadd.f32 %v1732, %v1844
    %v1846 = vpop.f32.mrf.mxu0
    %v1847 = vadd.f32 %v1734, %v1846
    %1848 = vmatprep.mubr.bf16.mxu0 %v1254
    %1849 = vmatmul.mubr.bf16.gmra.mxu0 %v1253
    %v1850 = vpop.f32.mrf.mxu0
    %v1851 = vadd.f32 %v1738, %v1850
    %v1852 = vpop.f32.mrf.mxu0
    %v1853 = vadd.f32 %v1740, %v1852
    %v1854 = vpop.f32.mrf.mxu0
    %v1855 = vadd.f32 %v1742, %v1854
    %v1856 = vpop.f32.mrf.mxu0
    %v1857 = vadd.f32 %v1744, %v1856
    %1858 = vmatprep.mubr.bf16.mxu0 %v1258
    %1859 = vmatmul.mubr.bf16.gmra.mxu0 %v1257
    %v1860 = vpop.f32.mrf.mxu0
    %v1861 = vadd.f32 %v1748, %v1860
    %v1862 = vpop.f32.mrf.mxu0
    %v1863 = vadd.f32 %v1750, %v1862
    %v1864 = vpop.f32.mrf.mxu0
    %v1865 = vadd.f32 %v1752, %v1864
    %v1866 = vpop.f32.mrf.mxu0
    %v1867 = vadd.f32 %v1754, %v1866
    %1868 = vmatprep.mubr.bf16.mxu0 %v1262
    %1869 = vmatmul.mubr.bf16.gmra.mxu0 %v1261
    %v1870 = vpop.f32.mrf.mxu0
    %v1871 = vadd.f32 %v1758, %v1870
    %v1872 = vpop.f32.mrf.mxu0
    %v1873 = vadd.f32 %v1760, %v1872
    %v1874 = vpop.f32.mrf.mxu0
    %v1875 = vadd.f32 %v1762, %v1874
    %v1876 = vpop.f32.mrf.mxu0
    %v1877 = vadd.f32 %v1764, %v1876
    %1878 = vmatprep.mubr.bf16.mxu0 %v1266
    %1879 = vmatmul.mubr.bf16.gmra.mxu0 %v1265
    %v1880 = vpop.f32.mrf.mxu0
    %v1881 = vadd.f32 %v1768, %v1880
    %v1882 = vpop.f32.mrf.mxu0
    %v1883 = vadd.f32 %v1770, %v1882
    %v1884 = vpop.f32.mrf.mxu0
    %v1885 = vadd.f32 %v1772, %v1884
    %v1886 = vpop.f32.mrf.mxu0
    %v1887 = vadd.f32 %v1774, %v1886
    %1888 = vdwg.mxu0
    %v1889 = vmul.f32 %v1811, 0.2
    %v1890 = vmul.f32 %v1813, 0.2
    %v1891 = vmul.f32 %v1815, 0.2
    %v1892 = vmul.f32 %v1817, 0.2
    %v1893 = vmul.f32 %v1821, 0.2
    %v1894 = vmul.f32 %v1823, 0.2
    %v1895 = vmul.f32 %v1825, 0.2
    %v1896 = vmul.f32 %v1827, 0.2
    %v1897 = vmul.f32 %v1831, 0.2
    %v1898 = vmul.f32 %v1833, 0.2
    %v1899 = vmul.f32 %v1835, 0.2
    %v1900 = vmul.f32 %v1837, 0.2
    %v1901 = vmul.f32 %v1841, 0.2
    %v1902 = vmul.f32 %v1843, 0.2
    %v1903 = vmul.f32 %v1845, 0.2
    %v1904 = vmul.f32 %v1847, 0.2
    %v1905 = vmul.f32 %v1851, 0.2
    %v1906 = vmul.f32 %v1853, 0.2
    %v1907 = vmul.f32 %v1855, 0.2
    %v1908 = vmul.f32 %v1857, 0.2
    %v1909 = vmul.f32 %v1861, 0.2
    %v1910 = vmul.f32 %v1863, 0.2
    %v1911 = vmul.f32 %v1865, 0.2
    %v1912 = vmul.f32 %v1867, 0.2
    %v1913 = vmul.f32 %v1871, 0.2
    %v1914 = vmul.f32 %v1873, 0.2
    %v1915 = vmul.f32 %v1875, 0.2
    %v1916 = vmul.f32 %v1877, 0.2
    %v1917 = vmul.f32 %v1881, 0.2
    %v1918 = vmul.f32 %v1883, 0.2
    %v1919 = vmul.f32 %v1885, 0.2
    %v1920 = vmul.f32 %v1887, 0.2
    %v1921 = vmax.f32 %v1811, %v1889
    %v1922 = vmax.f32 %v1813, %v1890
    %v1923 = vmax.f32 %v1815, %v1891
    %v1924 = vmax.f32 %v1817, %v1892
    %v1925 = vmax.f32 %v1821, %v1893
    %v1926 = vmax.f32 %v1823, %v1894
    %v1927 = vmax.f32 %v1825, %v1895
    %v1928 = vmax.f32 %v1827, %v1896
    %v1929 = vmax.f32 %v1831, %v1897
    %v1930 = vmax.f32 %v1833, %v1898
    %v1931 = vmax.f32 %v1835, %v1899
    %v1932 = vmax.f32 %v1837, %v1900
    %v1933 = vmax.f32 %v1841, %v1901
    %v1934 = vmax.f32 %v1843, %v1902
    %v1935 = vmax.f32 %v1845, %v1903
    %v1936 = vmax.f32 %v1847, %v1904
    %v1937 = vmax.f32 %v1851, %v1905
    %v1938 = vmax.f32 %v1853, %v1906
    %v1939 = vmax.f32 %v1855, %v1907
    %v1940 = vmax.f32 %v1857, %v1908
    %v1941 = vmax.f32 %v1861, %v1909
    %v1942 = vmax.f32 %v1863, %v1910
    %v1943 = vmax.f32 %v1865, %v1911
    %v1944 = vmax.f32 %v1867, %v1912
    %v1945 = vmax.f32 %v1871, %v1913
    %v1946 = vmax.f32 %v1873, %v1914
    %v1947 = vmax.f32 %v1875, %v1915
    %v1948 = vmax.f32 %v1877, %v1916
    %v1949 = vmax.f32 %v1881, %v1917
    %v1950 = vmax.f32 %v1883, %v1918
    %v1951 = vmax.f32 %v1885, %v1919
    %v1952 = vmax.f32 %v1887, %v1920
    %v1953 = vld [vmem:[#allocation9] sm:$0xff]
    %v1954 = vld [vmem:[#allocation9 + $0x8] sm:$0xff]
    %1955 = vmatprep.subr.mxu0 %v1952
    %1956 = vmatpush1.xpose.msra.mxu0 %v1951
    %1957 = vmatprep.subr.mxu0 %v1950
    %1958 = vmatpush1.xpose.msra.mxu0 %v1949
    %1959 = vmatprep.subr.mxu0 %v1948
    %1960 = vmatpush1.xpose.msra.mxu0 %v1947
    %1961 = vmatprep.subr.mxu0 %v1946
    %1962 = vmatpush1.xpose.msra.mxu0 %v1945
    %1963 = vmatprep.subr.mxu0 %v1944
    %1964 = vmatpush1.xpose.msra.mxu0 %v1943
    %1965 = vmatprep.subr.mxu0 %v1942
    %1966 = vmatpush1.xpose.msra.mxu0 %v1941
    %1967 = vmatprep.subr.mxu0 %v1940
    %1968 = vmatpush1.xpose.msra.mxu0 %v1939
    %1969 = vmatprep.subr.mxu0 %v1938
    %1970 = vmatpush1.xpose.msra.mxu0 %v1937
    %1971 = vmatprep.subr.mxu0 %v1936
    %1972 = vmatpush1.xpose.msra.mxu0 %v1935
    %1973 = vmatprep.subr.mxu0 %v1934
    %1974 = vmatpush1.xpose.msra.mxu0 %v1933
    %1975 = vmatprep.subr.mxu0 %v1932
    %1976 = vmatpush1.xpose.msra.mxu0 %v1931
    %1977 = vmatprep.subr.mxu0 %v1930
    %1978 = vmatpush1.xpose.msra.mxu0 %v1929
    %1979 = vmatprep.subr.mxu0 %v1928
    %1980 = vmatpush1.xpose.msra.mxu0 %v1927
    %1981 = vmatprep.subr.mxu0 %v1926
    %1982 = vmatpush1.xpose.msra.mxu0 %v1925
    %1983 = vmatprep.subr.mxu0 %v1924
    %1984 = vmatpush1.xpose.msra.mxu0 %v1923
    %1985 = vmatprep.subr.mxu0 %v1922
    %1986 = vmatpush1.xpose.msra.mxu0 %v1921
    %1987 = vmatprep.subr.mxu0 0.0
    %1988 = vmatpush2.xpose.msra.mxu0 0.0
    %1989 = vmatprep.subr.mxu0 0.0
    %1990 = vmatpush2.xpose.msra.mxu0 0.0
    %1991 = vmatprep.subr.mxu0 0.0
    %1992 = vmatpush2.xpose.msra.mxu0 0.0
    %1993 = vmatprep.subr.mxu0 0.0
    %1994 = vmatpush2.xpose.msra.mxu0 0.0
    %1995 = vmatprep.subr.mxu0 0.0
    %1996 = vmatpush2.xpose.msra.mxu0 0.0
    %1997 = vmatprep.subr.mxu0 0.0
    %1998 = vmatpush2.xpose.msra.mxu0 0.0
    %1999 = vmatprep.subr.mxu0 0.0
    %2000 = vmatpush2.xpose.msra.mxu0 0.0
    %2001 = vmatprep.subr.mxu0 0.0
    %2002 = vmatpush2.xpose.msra.mxu0 0.0
    %2003 = vmatprep.subr.mxu0 0.0
    %2004 = vmatpush2.xpose.msra.mxu0 0.0
    %2005 = vmatprep.subr.mxu0 0.0
    %2006 = vmatpush2.xpose.msra.mxu0 0.0
    %2007 = vmatprep.subr.mxu0 0.0
    %2008 = vmatpush2.xpose.msra.mxu0 0.0
    %2009 = vmatprep.subr.mxu0 0.0
    %2010 = vmatpush2.xpose.msra.mxu0 0.0
    %2011 = vmatprep.subr.mxu0 0.0
    %2012 = vmatpush2.xpose.msra.mxu0 0.0
    %2013 = vmatprep.subr.mxu0 0.0
    %2014 = vmatpush2.xpose.msra.mxu0 0.0
    %2015 = vmatprep.subr.mxu0 0.0
    %2016 = vmatpush2.xpose.msra.mxu0 0.0
    %2017 = vmatprep.subr.mxu0 0.0
    %2018 = vmatpush2.xpose.msra.mxu0 0.0
    %2019 = vmatprep.mubr.f32.mxu0 %v1954
    %2020 = vmatmul.mubr.f32.gmra.mxu0 %v1953
    %v2021 = vpop.f32.mrf.mxu0
    %v2022 = vadd.f32 0.0, %v2021
    %v2023 = vpop.f32.mrf.mxu0
    %2024 = vdwg.mxu0
    %s2025 = sld [smem:[#allocation2]]
    %v2026 = vstv %s2025
    %v2027 = vadd.f32 %v2022, %v2026
    %v2028 = vxor.u32 %v2027, 2147483648
    %v2029 = vmul.f32 %v2028, 1.442695
    %v2030 = vpow.pop %v2029
    %v2031 = vadd.f32 %v2030, 1.0
    %v2032 = vrcp.pop %v2031
    %v2033 = vmul.f32 1.0, %v2032
    %2034 = vst [vmem:[#allocation11] sm:$0x1] %v2033
    // Predicated region
    $region46: #{tpu_custom_call.1} parent=1 // pred_check
      _
    $region47: #{tpu_custom_call.1} parent=1 // pred_check_branch
      %2036 = sbr.rel (0) target = $region49
    $region48: #{tpu_custom_call.1} parent=1 // pred_region
      %s2038 = ssub.s32 16, 16
      %2039 = vsyncadd [#allocation5], %s2038
      %s2041 = sshll.u32 [#allocation11], 4
      %s2042 = int_to_ptr.vmem [resolvable:$true] %s2041
      %2044 = dma.vmem_to_hbm [thread:$0]  %s2042, 16, %s7, [#allocation5]
    $region49: #{tpu_custom_call.1} parent=1 // pred_fallthru
      _
    // Predicated region
    $region50: #{tpu_custom_call.1} parent=1 // pred_check
      _
    $region51: #{tpu_custom_call.1} parent=1 // pred_check_branch
      %2046 = sbr.rel (0) target = $region53
    $region52: #{tpu_custom_call.1} parent=1 // pred_region
      %2047 = dma.done [#allocation5], 16
    $region53: #{tpu_custom_call.1} parent=1 // pred_fallthru
      _
    %2048 = vsyncpa [#allocation4], 1
    %2049 = vsyncpa [#allocation7], 1
    %2050 = vsyncpa [#allocation10], 1
    %2051 = vsyncpa [#allocation5], 1

</llo_original>
